<compile_context>
chip_gen: v5e
topology: v5e:2x2
jax: 0.10.0
libtpu: 0.0.40
codegen_flags: <defaults>
</compile_context>

<pallas_src>
import jax
import jax.numpy as jnp
from jax import lax
from jax.experimental import pallas as pl
from jax.experimental.pallas import tpu as pltpu


# ----------------------------------------------------------------------------
# Fused Pallas kernel: all GRU layers + FC head
# ----------------------------------------------------------------------------
def _make_fused_kernel(n_layers, T, B, H):
    """Build the fused kernel for a fixed (n_layers, T, B, H) configuration.

    Kernel ref layout (positional):
      x_ref                        (T*B, D0)   time-major, flattened over (T, B)
      per layer l in [0, n_layers): wih (D_l, 3H), whh (H, 3H),
                                    bih (1, 3H),  bhh (1, 3H)
      w_fc                         (H, 1)
      b_fc                         (1, 1)
      out_ref                      (B, 1)
      gi_scr                       (T*B, 3H)  f32 scratch (input projection)
      act_scr                      (T*B, H)   f32 scratch (inter-layer acts)
    """

    def kernel(*args):
        x_ref = args[0]
        layer_refs = args[1:1 + 4 * n_layers]
        wfc_ref = args[1 + 4 * n_layers]
        bfc_ref = args[2 + 4 * n_layers]
        out_ref = args[3 + 4 * n_layers]
        gi_scr = args[4 + 4 * n_layers]
        act_scr = args[5 + 4 * n_layers]

        h_last = None
        for l in range(n_layers):
            wih_ref, whh_ref, bih_ref, bhh_ref = layer_refs[4 * l:4 * (l + 1)]

            # Layer input: x for layer 0, previous layer's VMEM activations
            # otherwise. Shape (T*B, D_l).
            cur = x_ref[...] if l == 0 else act_scr[...]
            cur = cur.astype(jnp.float32)

            # Hoisted input projection: one big matmul per layer, bias folded
            # in once (instead of 3*T tiny matmuls inside the recurrence).
            gi_scr[...] = (
                jnp.dot(cur, wih_ref[...], preferred_element_type=jnp.float32)
                + bih_ref[...]
            )

            whh = whh_ref[...]          # (H, 3H), resident across timesteps
            bhh = bhh_ref[...]          # (1, 3H)
            is_last_layer = (l == n_layers - 1)

            def step(t, h, _whh=whh, _bhh=bhh, _last=is_last_layer):
                # Single recurrent matmul per step: (B, H) @ (H, 3H).
                gh = jnp.dot(h, _whh, preferred_element_type=jnp.float32) + _bhh
                gi_t = gi_scr[pl.ds(t * B, B), :]          # (B, 3H)
                r = jax.nn.sigmoid(gi_t[:, 0:H] + gh[:, 0:H])
                z = jax.nn.sigmoid(gi_t[:, H:2 * H] + gh[:, H:2 * H])
                n = jnp.tanh(gi_t[:, 2 * H:3 * H] + r * gh[:, 2 * H:3 * H])
                h_new = (1.0 - z) * n + z * h
                if not _last:
                    # Intermediate layers: keep per-step outputs in VMEM only.
                    act_scr[pl.ds(t * B, B), :] = h_new
                return h_new

            h0 = jnp.zeros((B, H), jnp.float32)
            # Sequential recurrence lives inside the kernel body (no grid over
            # time), so there is no risk of megacore parallelizing it.
            h_last = lax.fori_loop(0, T, step, h0, unroll=(T <= 32))

        # FC head fused in: logits = h_T @ W_fc + b_fc.
        out_ref[...] = (
            jnp.dot(h_last, wfc_ref[...], preferred_element_type=jnp.float32)
            + bfc_ref[...]
        ).astype(out_ref.dtype)

    return kernel


# ----------------------------------------------------------------------------
# Wrapper
# ----------------------------------------------------------------------------
@jax.jit
def gru_classifier_forward(x, layer_params, w_fc, b_fc):
    """x: (B, T, input_size) batch-first, like PyTorch. Returns (B, 1)."""
    B, T, D = x.shape
    n_layers = len(layer_params)
    H = layer_params[0][1].shape[0]           # whh: (H, 3H)

    # Time-major + flattened over (T, B): row t*B + b is sample b at step t.
    x_flat = jnp.transpose(x, (1, 0, 2)).reshape(T * B, D)

    flat_params = []
    in_specs = [pl.BlockSpec((T * B, D), lambda: (0, 0))]
    for (wih, whh, bih, bhh) in layer_params:
        d_in = wih.shape[0]
        flat_params += [wih, whh, bih, bhh]
        in_specs += [
            pl.BlockSpec((d_in, 3 * H), lambda: (0, 0)),
            pl.BlockSpec((H, 3 * H), lambda: (0, 0)),
            pl.BlockSpec((1, 3 * H), lambda: (0, 0)),
            pl.BlockSpec((1, 3 * H), lambda: (0, 0)),
        ]
    in_specs += [
        pl.BlockSpec((H, 1), lambda: (0, 0)),
        pl.BlockSpec((1, 1), lambda: (0, 0)),
    ]

    kernel = _make_fused_kernel(n_layers, T, B, H)

    return pl.pallas_call(
        kernel,
        out_shape=jax.ShapeDtypeStruct((B, 1), jnp.float32),
        grid=(),
        in_specs=in_specs,
        out_specs=pl.BlockSpec((B, 1), lambda: (0, 0)),
        scratch_shapes=[
            pltpu.VMEM((T * B, 3 * H), jnp.float32),   # hoisted input projection
            pltpu.VMEM((T * B, H), jnp.float32),       # inter-layer activations
        ],
    )(x_flat, *flat_params, w_fc, b_fc)


# ----------------------------------------------------------------------------
# Pure-JAX reference (for correctness check)
# ----------------------------------------------------------------------------
def gru_classifier_ref(x, layer_params, w_fc, b_fc):
    B = x.shape[0]
    inp = jnp.transpose(x, (1, 0, 2))          # (T, B, D)
    for (wih, whh, bih, bhh) in layer_params:
        H = whh.shape[0]

        def step(h, x_t):
            gi = x_t @ wih + bih               # (B, 3H)
            gh = h @ whh + bhh                 # (B, 3H)
            r = jax.nn.sigmoid(gi[:, 0:H] + gh[:, 0:H])
            z = jax.nn.sigmoid(gi[:, H:2 * H] + gh[:, H:2 * H])
            n = jnp.tanh(gi[:, 2 * H:3 * H] + r * gh[:, 2 * H:3 * H])
            h_new = (1.0 - z) * n + z * h
            return h_new, h_new

        _, outs = jax.lax.scan(step, jnp.zeros((B, H), jnp.float32), inp)
        inp = outs
    return inp[-1] @ w_fc + b_fc


# ----------------------------------------------------------------------------
# Deterministic parameter construction (shapes per nn.GRU / nn.Linear,
# stored transposed + gate-concatenated: (D, 3H) / (H, 3H), gate order r,z,n)
# ----------------------------------------------------------------------------
def init_params(key, input_size, hidden_size, n_layers):
    scale = 1.0 / jnp.sqrt(jnp.float32(hidden_size))
    layer_params = []
    for l in range(n_layers):
        d_in = input_size if l == 0 else hidden_size
        key, k1, k2, k3, k4 = jax.random.split(key, 5)
        wih = jax.random.uniform(k1, (d_in, 3 * hidden_size),
                                 jnp.float32, -scale, scale)
        whh = jax.random.uniform(k2, (hidden_size, 3 * hidden_size),
                                 jnp.float32, -scale, scale)
        bih = jax.random.uniform(k3, (1, 3 * hidden_size),
                                 jnp.float32, -scale, scale)
        bhh = jax.random.uniform(k4, (1, 3 * hidden_size),
                                 jnp.float32, -scale, scale)
        layer_params.append((wih, whh, bih, bhh))
    key, k5, k6 = jax.random.split(key, 3)
    # nn.Linear(hidden_size, 1): weight (1, H), bias (1,). Stored transposed.
    w_fc = jax.random.uniform(k5, (hidden_size, 1), jnp.float32, -scale, scale)
    b_fc = jax.random.uniform(k6, (1, 1), jnp.float32, -scale, scale)
    return layer_params, w_fc, b_fc


if __name__ == "__main__":
    # Small shapes consistent with the module's forward:
    # x: (batch=2, seq=8, input_size=16); hidden=32; n_layers=2; dropout is a
    # no-op in eval mode.
    B, T, INPUT_SIZE, HIDDEN, N_LAYERS = 2, 8, 16, 32, 2

    key = jax.random.PRNGKey(0)
    key, kx = jax.random.split(key)
    x = jax.random.normal(kx, (B, T, INPUT_SIZE), jnp.float32)

    layer_params, w_fc, b_fc = init_params(key, INPUT_SIZE, HIDDEN, N_LAYERS)

    out = gru_classifier_forward(x, layer_params, w_fc, b_fc)
    out = jax.block_until_ready(out)

    ref = gru_classifier_ref(x, layer_params, w_fc, b_fc)
    assert out.shape == (B, 1), out.shape
    assert jnp.allclose(out, ref, atol=1e-5, rtol=1e-5), (out, ref)

    print("KERNEL_OK")
</pallas_src>

<mosaic_0001>
module attributes {stable_mosaic.version = 11 : i64} {
  func.func @kernel(%arg0: memref<16x16xf32, #tpu.memory_space<vmem>>, %arg1: memref<16x96xf32, #tpu.memory_space<vmem>>, %arg2: memref<32x96xf32, #tpu.memory_space<vmem>>, %arg3: memref<1x96xf32, #tpu.memory_space<vmem>>, %arg4: memref<1x96xf32, #tpu.memory_space<vmem>>, %arg5: memref<32x96xf32, #tpu.memory_space<vmem>>, %arg6: memref<32x96xf32, #tpu.memory_space<vmem>>, %arg7: memref<1x96xf32, #tpu.memory_space<vmem>>, %arg8: memref<1x96xf32, #tpu.memory_space<vmem>>, %arg9: memref<32x1xf32, #tpu.memory_space<vmem>>, %arg10: memref<1x1xf32, #tpu.memory_space<vmem>>, %arg11: memref<2x1xf32, #tpu.memory_space<vmem>>, %arg12: memref<16x96xf32, #tpu.memory_space<vmem>>, %arg13: memref<16x32xf32, #tpu.memory_space<vmem>>) attributes {dimension_semantics = [], scalar_prefetch = 0 : i64, scratch_operands = 2 : i64, tpu.core_type = #tpu.core_type<tc>} {
    %c0 = arith.constant 0 : index
    %c0_0 = arith.constant 0 : index
    %0 = vector.load %arg0[%c0, %c0_0] : memref<16x16xf32, #tpu.memory_space<vmem>>, vector<16x16xf32>
    %c0_1 = arith.constant 0 : index
    %c0_2 = arith.constant 0 : index
    %1 = vector.load %arg1[%c0_1, %c0_2] : memref<16x96xf32, #tpu.memory_space<vmem>>, vector<16x96xf32>
    %cst = arith.constant dense<0.000000e+00> : vector<16x96xf32>
    %2 = tpu.matmul %0, %1, %cst {dimension_numbers = #tpu.dot_dimension_numbers<[1], [0], [0], [1], [0, 0, 1, 1], [], []>} : vector<16x16xf32>, vector<16x96xf32>, vector<16x96xf32> -> vector<16x96xf32>
    %c0_3 = arith.constant 0 : index
    %c0_4 = arith.constant 0 : index
    %3 = vector.load %arg3[%c0_3, %c0_4] : memref<1x96xf32, #tpu.memory_space<vmem>>, vector<1x96xf32>
    %4 = vector.broadcast %3 : vector<1x96xf32> to vector<16x96xf32>
    %5 = arith.addf %2, %4 : vector<16x96xf32>
    %c0_5 = arith.constant 0 : index
    %c0_6 = arith.constant 0 : index
    %6 = vector.load %arg12[%c0_5, %c0_6] : memref<16x96xf32, #tpu.memory_space<vmem>>, vector<16x96xf32>
    tpu.vector_store %arg12[%c0_5, %c0_6], %5 {strides = array<i32>} : memref<16x96xf32, #tpu.memory_space<vmem>>, vector<16x96xf32>,
    %c0_7 = arith.constant 0 : index
    %c0_8 = arith.constant 0 : index
    %7 = vector.load %arg2[%c0_7, %c0_8] : memref<32x96xf32, #tpu.memory_space<vmem>>, vector<32x96xf32>
    %c0_9 = arith.constant 0 : index
    %c0_10 = arith.constant 0 : index
    %8 = vector.load %arg4[%c0_9, %c0_10] : memref<1x96xf32, #tpu.memory_space<vmem>>, vector<1x96xf32>
    %cst_11 = arith.constant 0.000000e+00 : f32
    %9 = vector.broadcast %cst_11 : f32 to vector<2x32xf32>
    %c0_i32 = arith.constant 0 : i32
    %cst_12 = arith.constant dense<0.000000e+00> : vector<2x96xf32>
    %10 = tpu.matmul %9, %7, %cst_12 {dimension_numbers = #tpu.dot_dimension_numbers<[1], [0], [0], [1], [0, 0, 1, 1], [], []>} : vector<2x32xf32>, vector<32x96xf32>, vector<2x96xf32> -> vector<2x96xf32>
    %11 = vector.broadcast %8 : vector<1x96xf32> to vector<2x96xf32>
    %12 = arith.addf %10, %11 : vector<2x96xf32>
    %c2_i32 = arith.constant 2 : i32
    %13 = arith.muli %c0_i32, %c2_i32 : i32
    %14 = arith.index_cast %13 : i32 to index
    %c0_13 = arith.constant 0 : index
    %15 = vector.load %arg12[%14, %c0_13] : memref<16x96xf32, #tpu.memory_space<vmem>>, vector<2x96xf32>
    %16 = vector.extract_strided_slice %15 {offsets = [0, 0], sizes = [2, 32], strides = [1, 1]} : vector<2x96xf32> to vector<2x32xf32>
    %17 = vector.extract_strided_slice %12 {offsets = [0, 0], sizes = [2, 32], strides = [1, 1]} : vector<2x96xf32> to vector<2x32xf32>
    %18 = arith.addf %16, %17 : vector<2x32xf32>
    %19 = arith.negf %18 : vector<2x32xf32>
    %20 = math.exp %19 : vector<2x32xf32>
    %cst_14 = arith.constant 1.000000e+00 : f32
    %21 = vector.broadcast %cst_14 : f32 to vector<2x32xf32>
    %22 = arith.addf %21, %20 : vector<2x32xf32>
    %23 = arith.divf %21, %22 : vector<2x32xf32>
    %24 = vector.extract_strided_slice %15 {offsets = [0, 32], sizes = [2, 32], strides = [1, 1]} : vector<2x96xf32> to vector<2x32xf32>
    %25 = vector.extract_strided_slice %12 {offsets = [0, 32], sizes = [2, 32], strides = [1, 1]} : vector<2x96xf32> to vector<2x32xf32>
    %26 = arith.addf %24, %25 : vector<2x32xf32>
    %27 = arith.negf %26 : vector<2x32xf32>
    %28 = math.exp %27 : vector<2x32xf32>
    %cst_15 = arith.constant 1.000000e+00 : f32
    %29 = vector.broadcast %cst_15 : f32 to vector<2x32xf32>
    %30 = arith.addf %29, %28 : vector<2x32xf32>
    %31 = arith.divf %29, %30 : vector<2x32xf32>
    %32 = vector.extract_strided_slice %15 {offsets = [0, 64], sizes = [2, 32], strides = [1, 1]} : vector<2x96xf32> to vector<2x32xf32>
    %33 = vector.extract_strided_slice %12 {offsets = [0, 64], sizes = [2, 32], strides = [1, 1]} : vector<2x96xf32> to vector<2x32xf32>
    %34 = arith.mulf %23, %33 : vector<2x32xf32>
    %35 = arith.addf %32, %34 : vector<2x32xf32>
    %36 = math.tanh %35 : vector<2x32xf32>
    %cst_16 = arith.constant 1.000000e+00 : f32
    %37 = vector.broadcast %cst_16 : f32 to vector<2x32xf32>
    %38 = arith.subf %37, %31 : vector<2x32xf32>
    %39 = arith.mulf %38, %36 : vector<2x32xf32>
    %40 = arith.mulf %31, %9 : vector<2x32xf32>
    %41 = arith.addf %39, %40 : vector<2x32xf32>
    %c2_i32_17 = arith.constant 2 : i32
    %42 = arith.muli %c0_i32, %c2_i32_17 : i32
    %43 = arith.index_cast %42 : i32 to index
    %c0_18 = arith.constant 0 : index
    %44 = vector.load %arg13[%43, %c0_18] : memref<16x32xf32, #tpu.memory_space<vmem>>, vector<2x32xf32>
    tpu.vector_store %arg13[%43, %c0_18], %41 {strides = array<i32>} : memref<16x32xf32, #tpu.memory_space<vmem>>, vector<2x32xf32>,
    %c1_i32 = arith.constant 1 : i32
    %cst_19 = arith.constant dense<0.000000e+00> : vector<2x96xf32>
    %45 = tpu.matmul %41, %7, %cst_19 {dimension_numbers = #tpu.dot_dimension_numbers<[1], [0], [0], [1], [0, 0, 1, 1], [], []>} : vector<2x32xf32>, vector<32x96xf32>, vector<2x96xf32> -> vector<2x96xf32>
    %46 = vector.broadcast %8 : vector<1x96xf32> to vector<2x96xf32>
    %47 = arith.addf %45, %46 : vector<2x96xf32>
    %c2_i32_20 = arith.constant 2 : i32
    %48 = arith.muli %c1_i32, %c2_i32_20 : i32
    %49 = arith.index_cast %48 : i32 to index
    %c0_21 = arith.constant 0 : index
    %50 = vector.load %arg12[%49, %c0_21] : memref<16x96xf32, #tpu.memory_space<vmem>>, vector<2x96xf32>
    %51 = vector.extract_strided_slice %50 {offsets = [0, 0], sizes = [2, 32], strides = [1, 1]} : vector<2x96xf32> to vector<2x32xf32>
    %52 = vector.extract_strided_slice %47 {offsets = [0, 0], sizes = [2, 32], strides = [1, 1]} : vector<2x96xf32> to vector<2x32xf32>
    %53 = arith.addf %51, %52 : vector<2x32xf32>
    %54 = arith.negf %53 : vector<2x32xf32>
    %55 = math.exp %54 : vector<2x32xf32>
    %cst_22 = arith.constant 1.000000e+00 : f32
    %56 = vector.broadcast %cst_22 : f32 to vector<2x32xf32>
    %57 = arith.addf %56, %55 : vector<2x32xf32>
    %58 = arith.divf %56, %57 : vector<2x32xf32>
    %59 = vector.extract_strided_slice %50 {offsets = [0, 32], sizes = [2, 32], strides = [1, 1]} : vector<2x96xf32> to vector<2x32xf32>
    %60 = vector.extract_strided_slice %47 {offsets = [0, 32], sizes = [2, 32], strides = [1, 1]} : vector<2x96xf32> to vector<2x32xf32>
    %61 = arith.addf %59, %60 : vector<2x32xf32>
    %62 = arith.negf %61 : vector<2x32xf32>
    %63 = math.exp %62 : vector<2x32xf32>
    %cst_23 = arith.constant 1.000000e+00 : f32
    %64 = vector.broadcast %cst_23 : f32 to vector<2x32xf32>
    %65 = arith.addf %64, %63 : vector<2x32xf32>
    %66 = arith.divf %64, %65 : vector<2x32xf32>
    %67 = vector.extract_strided_slice %50 {offsets = [0, 64], sizes = [2, 32], strides = [1, 1]} : vector<2x96xf32> to vector<2x32xf32>
    %68 = vector.extract_strided_slice %47 {offsets = [0, 64], sizes = [2, 32], strides = [1, 1]} : vector<2x96xf32> to vector<2x32xf32>
    %69 = arith.mulf %58, %68 : vector<2x32xf32>
    %70 = arith.addf %67, %69 : vector<2x32xf32>
    %71 = math.tanh %70 : vector<2x32xf32>
    %cst_24 = arith.constant 1.000000e+00 : f32
    %72 = vector.broadcast %cst_24 : f32 to vector<2x32xf32>
    %73 = arith.subf %72, %66 : vector<2x32xf32>
    %74 = arith.mulf %73, %71 : vector<2x32xf32>
    %75 = arith.mulf %66, %41 : vector<2x32xf32>
    %76 = arith.addf %74, %75 : vector<2x32xf32>
    %c2_i32_25 = arith.constant 2 : i32
    %77 = arith.muli %c1_i32, %c2_i32_25 : i32
    %78 = arith.index_cast %77 : i32 to index
    %c0_26 = arith.constant 0 : index
    %79 = vector.load %arg13[%78, %c0_26] : memref<16x32xf32, #tpu.memory_space<vmem>>, vector<2x32xf32>
    tpu.vector_store %arg13[%78, %c0_26], %76 {strides = array<i32>} : memref<16x32xf32, #tpu.memory_space<vmem>>, vector<2x32xf32>,
    %c2_i32_27 = arith.constant 2 : i32
    %cst_28 = arith.constant dense<0.000000e+00> : vector<2x96xf32>
    %80 = tpu.matmul %76, %7, %cst_28 {dimension_numbers = #tpu.dot_dimension_numbers<[1], [0], [0], [1], [0, 0, 1, 1], [], []>} : vector<2x32xf32>, vector<32x96xf32>, vector<2x96xf32> -> vector<2x96xf32>
    %81 = vector.broadcast %8 : vector<1x96xf32> to vector<2x96xf32>
    %82 = arith.addf %80, %81 : vector<2x96xf32>
    %c2_i32_29 = arith.constant 2 : i32
    %83 = arith.muli %c2_i32_27, %c2_i32_29 : i32
    %84 = arith.index_cast %83 : i32 to index
    %c0_30 = arith.constant 0 : index
    %85 = vector.load %arg12[%84, %c0_30] : memref<16x96xf32, #tpu.memory_space<vmem>>, vector<2x96xf32>
    %86 = vector.extract_strided_slice %85 {offsets = [0, 0], sizes = [2, 32], strides = [1, 1]} : vector<2x96xf32> to vector<2x32xf32>
    %87 = vector.extract_strided_slice %82 {offsets = [0, 0], sizes = [2, 32], strides = [1, 1]} : vector<2x96xf32> to vector<2x32xf32>
    %88 = arith.addf %86, %87 : vector<2x32xf32>
    %89 = arith.negf %88 : vector<2x32xf32>
    %90 = math.exp %89 : vector<2x32xf32>
    %cst_31 = arith.constant 1.000000e+00 : f32
    %91 = vector.broadcast %cst_31 : f32 to vector<2x32xf32>
    %92 = arith.addf %91, %90 : vector<2x32xf32>
    %93 = arith.divf %91, %92 : vector<2x32xf32>
    %94 = vector.extract_strided_slice %85 {offsets = [0, 32], sizes = [2, 32], strides = [1, 1]} : vector<2x96xf32> to vector<2x32xf32>
    %95 = vector.extract_strided_slice %82 {offsets = [0, 32], sizes = [2, 32], strides = [1, 1]} : vector<2x96xf32> to vector<2x32xf32>
    %96 = arith.addf %94, %95 : vector<2x32xf32>
    %97 = arith.negf %96 : vector<2x32xf32>
    %98 = math.exp %97 : vector<2x32xf32>
    %cst_32 = arith.constant 1.000000e+00 : f32
    %99 = vector.broadcast %cst_32 : f32 to vector<2x32xf32>
    %100 = arith.addf %99, %98 : vector<2x32xf32>
    %101 = arith.divf %99, %100 : vector<2x32xf32>
    %102 = vector.extract_strided_slice %85 {offsets = [0, 64], sizes = [2, 32], strides = [1, 1]} : vector<2x96xf32> to vector<2x32xf32>
    %103 = vector.extract_strided_slice %82 {offsets = [0, 64], sizes = [2, 32], strides = [1, 1]} : vector<2x96xf32> to vector<2x32xf32>
    %104 = arith.mulf %93, %103 : vector<2x32xf32>
    %105 = arith.addf %102, %104 : vector<2x32xf32>
    %106 = math.tanh %105 : vector<2x32xf32>
    %cst_33 = arith.constant 1.000000e+00 : f32
    %107 = vector.broadcast %cst_33 : f32 to vector<2x32xf32>
    %108 = arith.subf %107, %101 : vector<2x32xf32>
    %109 = arith.mulf %108, %106 : vector<2x32xf32>
    %110 = arith.mulf %101, %76 : vector<2x32xf32>
    %111 = arith.addf %109, %110 : vector<2x32xf32>
    %c2_i32_34 = arith.constant 2 : i32
    %112 = arith.muli %c2_i32_27, %c2_i32_34 : i32
    %113 = arith.index_cast %112 : i32 to index
    %c0_35 = arith.constant 0 : index
    %114 = vector.load %arg13[%113, %c0_35] : memref<16x32xf32, #tpu.memory_space<vmem>>, vector<2x32xf32>
    tpu.vector_store %arg13[%113, %c0_35], %111 {strides = array<i32>} : memref<16x32xf32, #tpu.memory_space<vmem>>, vector<2x32xf32>,
    %c3_i32 = arith.constant 3 : i32
    %cst_36 = arith.constant dense<0.000000e+00> : vector<2x96xf32>
    %115 = tpu.matmul %111, %7, %cst_36 {dimension_numbers = #tpu.dot_dimension_numbers<[1], [0], [0], [1], [0, 0, 1, 1], [], []>} : vector<2x32xf32>, vector<32x96xf32>, vector<2x96xf32> -> vector<2x96xf32>
    %116 = vector.broadcast %8 : vector<1x96xf32> to vector<2x96xf32>
    %117 = arith.addf %115, %116 : vector<2x96xf32>
    %c2_i32_37 = arith.constant 2 : i32
    %118 = arith.muli %c3_i32, %c2_i32_37 : i32
    %119 = arith.index_cast %118 : i32 to index
    %c0_38 = arith.constant 0 : index
    %120 = vector.load %arg12[%119, %c0_38] : memref<16x96xf32, #tpu.memory_space<vmem>>, vector<2x96xf32>
    %121 = vector.extract_strided_slice %120 {offsets = [0, 0], sizes = [2, 32], strides = [1, 1]} : vector<2x96xf32> to vector<2x32xf32>
    %122 = vector.extract_strided_slice %117 {offsets = [0, 0], sizes = [2, 32], strides = [1, 1]} : vector<2x96xf32> to vector<2x32xf32>
    %123 = arith.addf %121, %122 : vector<2x32xf32>
    %124 = arith.negf %123 : vector<2x32xf32>
    %125 = math.exp %124 : vector<2x32xf32>
    %cst_39 = arith.constant 1.000000e+00 : f32
    %126 = vector.broadcast %cst_39 : f32 to vector<2x32xf32>
    %127 = arith.addf %126, %125 : vector<2x32xf32>
    %128 = arith.divf %126, %127 : vector<2x32xf32>
    %129 = vector.extract_strided_slice %120 {offsets = [0, 32], sizes = [2, 32], strides = [1, 1]} : vector<2x96xf32> to vector<2x32xf32>
    %130 = vector.extract_strided_slice %117 {offsets = [0, 32], sizes = [2, 32], strides = [1, 1]} : vector<2x96xf32> to vector<2x32xf32>
    %131 = arith.addf %129, %130 : vector<2x32xf32>
    %132 = arith.negf %131 : vector<2x32xf32>
    %133 = math.exp %132 : vector<2x32xf32>
    %cst_40 = arith.constant 1.000000e+00 : f32
    %134 = vector.broadcast %cst_40 : f32 to vector<2x32xf32>
    %135 = arith.addf %134, %133 : vector<2x32xf32>
    %136 = arith.divf %134, %135 : vector<2x32xf32>
    %137 = vector.extract_strided_slice %120 {offsets = [0, 64], sizes = [2, 32], strides = [1, 1]} : vector<2x96xf32> to vector<2x32xf32>
    %138 = vector.extract_strided_slice %117 {offsets = [0, 64], sizes = [2, 32], strides = [1, 1]} : vector<2x96xf32> to vector<2x32xf32>
    %139 = arith.mulf %128, %138 : vector<2x32xf32>
    %140 = arith.addf %137, %139 : vector<2x32xf32>
    %141 = math.tanh %140 : vector<2x32xf32>
    %cst_41 = arith.constant 1.000000e+00 : f32
    %142 = vector.broadcast %cst_41 : f32 to vector<2x32xf32>
    %143 = arith.subf %142, %136 : vector<2x32xf32>
    %144 = arith.mulf %143, %141 : vector<2x32xf32>
    %145 = arith.mulf %136, %111 : vector<2x32xf32>
    %146 = arith.addf %144, %145 : vector<2x32xf32>
    %c2_i32_42 = arith.constant 2 : i32
    %147 = arith.muli %c3_i32, %c2_i32_42 : i32
    %148 = arith.index_cast %147 : i32 to index
    %c0_43 = arith.constant 0 : index
    %149 = vector.load %arg13[%148, %c0_43] : memref<16x32xf32, #tpu.memory_space<vmem>>, vector<2x32xf32>
    tpu.vector_store %arg13[%148, %c0_43], %146 {strides = array<i32>} : memref<16x32xf32, #tpu.memory_space<vmem>>, vector<2x32xf32>,
    %c4_i32 = arith.constant 4 : i32
    %cst_44 = arith.constant dense<0.000000e+00> : vector<2x96xf32>
    %150 = tpu.matmul %146, %7, %cst_44 {dimension_numbers = #tpu.dot_dimension_numbers<[1], [0], [0], [1], [0, 0, 1, 1], [], []>} : vector<2x32xf32>, vector<32x96xf32>, vector<2x96xf32> -> vector<2x96xf32>
    %151 = vector.broadcast %8 : vector<1x96xf32> to vector<2x96xf32>
    %152 = arith.addf %150, %151 : vector<2x96xf32>
    %c2_i32_45 = arith.constant 2 : i32
    %153 = arith.muli %c4_i32, %c2_i32_45 : i32
    %154 = arith.index_cast %153 : i32 to index
    %c0_46 = arith.constant 0 : index
    %155 = vector.load %arg12[%154, %c0_46] : memref<16x96xf32, #tpu.memory_space<vmem>>, vector<2x96xf32>
    %156 = vector.extract_strided_slice %155 {offsets = [0, 0], sizes = [2, 32], strides = [1, 1]} : vector<2x96xf32> to vector<2x32xf32>
    %157 = vector.extract_strided_slice %152 {offsets = [0, 0], sizes = [2, 32], strides = [1, 1]} : vector<2x96xf32> to vector<2x32xf32>
    %158 = arith.addf %156, %157 : vector<2x32xf32>
    %159 = arith.negf %158 : vector<2x32xf32>
    %160 = math.exp %159 : vector<2x32xf32>
    %cst_47 = arith.constant 1.000000e+00 : f32
    %161 = vector.broadcast %cst_47 : f32 to vector<2x32xf32>
    %162 = arith.addf %161, %160 : vector<2x32xf32>
    %163 = arith.divf %161, %162 : vector<2x32xf32>
    %164 = vector.extract_strided_slice %155 {offsets = [0, 32], sizes = [2, 32], strides = [1, 1]} : vector<2x96xf32> to vector<2x32xf32>
    %165 = vector.extract_strided_slice %152 {offsets = [0, 32], sizes = [2, 32], strides = [1, 1]} : vector<2x96xf32> to vector<2x32xf32>
    %166 = arith.addf %164, %165 : vector<2x32xf32>
    %167 = arith.negf %166 : vector<2x32xf32>
    %168 = math.exp %167 : vector<2x32xf32>
    %cst_48 = arith.constant 1.000000e+00 : f32
    %169 = vector.broadcast %cst_48 : f32 to vector<2x32xf32>
    %170 = arith.addf %169, %168 : vector<2x32xf32>
    %171 = arith.divf %169, %170 : vector<2x32xf32>
    %172 = vector.extract_strided_slice %155 {offsets = [0, 64], sizes = [2, 32], strides = [1, 1]} : vector<2x96xf32> to vector<2x32xf32>
    %173 = vector.extract_strided_slice %152 {offsets = [0, 64], sizes = [2, 32], strides = [1, 1]} : vector<2x96xf32> to vector<2x32xf32>
    %174 = arith.mulf %163, %173 : vector<2x32xf32>
    %175 = arith.addf %172, %174 : vector<2x32xf32>
    %176 = math.tanh %175 : vector<2x32xf32>
    %cst_49 = arith.constant 1.000000e+00 : f32
    %177 = vector.broadcast %cst_49 : f32 to vector<2x32xf32>
    %178 = arith.subf %177, %171 : vector<2x32xf32>
    %179 = arith.mulf %178, %176 : vector<2x32xf32>
    %180 = arith.mulf %171, %146 : vector<2x32xf32>
    %181 = arith.addf %179, %180 : vector<2x32xf32>
    %c2_i32_50 = arith.constant 2 : i32
    %182 = arith.muli %c4_i32, %c2_i32_50 : i32
    %183 = arith.index_cast %182 : i32 to index
    %c0_51 = arith.constant 0 : index
    %184 = vector.load %arg13[%183, %c0_51] : memref<16x32xf32, #tpu.memory_space<vmem>>, vector<2x32xf32>
    tpu.vector_store %arg13[%183, %c0_51], %181 {strides = array<i32>} : memref<16x32xf32, #tpu.memory_space<vmem>>, vector<2x32xf32>,
    %c5_i32 = arith.constant 5 : i32
    %cst_52 = arith.constant dense<0.000000e+00> : vector<2x96xf32>
    %185 = tpu.matmul %181, %7, %cst_52 {dimension_numbers = #tpu.dot_dimension_numbers<[1], [0], [0], [1], [0, 0, 1, 1], [], []>} : vector<2x32xf32>, vector<32x96xf32>, vector<2x96xf32> -> vector<2x96xf32>
    %186 = vector.broadcast %8 : vector<1x96xf32> to vector<2x96xf32>
    %187 = arith.addf %185, %186 : vector<2x96xf32>
    %c2_i32_53 = arith.constant 2 : i32
    %188 = arith.muli %c5_i32, %c2_i32_53 : i32
    %189 = arith.index_cast %188 : i32 to index
    %c0_54 = arith.constant 0 : index
    %190 = vector.load %arg12[%189, %c0_54] : memref<16x96xf32, #tpu.memory_space<vmem>>, vector<2x96xf32>
    %191 = vector.extract_strided_slice %190 {offsets = [0, 0], sizes = [2, 32], strides = [1, 1]} : vector<2x96xf32> to vector<2x32xf32>
    %192 = vector.extract_strided_slice %187 {offsets = [0, 0], sizes = [2, 32], strides = [1, 1]} : vector<2x96xf32> to vector<2x32xf32>
    %193 = arith.addf %191, %192 : vector<2x32xf32>
    %194 = arith.negf %193 : vector<2x32xf32>
    %195 = math.exp %194 : vector<2x32xf32>
    %cst_55 = arith.constant 1.000000e+00 : f32
    %196 = vector.broadcast %cst_55 : f32 to vector<2x32xf32>
    %197 = arith.addf %196, %195 : vector<2x32xf32>
    %198 = arith.divf %196, %197 : vector<2x32xf32>
    %199 = vector.extract_strided_slice %190 {offsets = [0, 32], sizes = [2, 32], strides = [1, 1]} : vector<2x96xf32> to vector<2x32xf32>
    %200 = vector.extract_strided_slice %187 {offsets = [0, 32], sizes = [2, 32], strides = [1, 1]} : vector<2x96xf32> to vector<2x32xf32>
    %201 = arith.addf %199, %200 : vector<2x32xf32>
    %202 = arith.negf %201 : vector<2x32xf32>
    %203 = math.exp %202 : vector<2x32xf32>
    %cst_56 = arith.constant 1.000000e+00 : f32
    %204 = vector.broadcast %cst_56 : f32 to vector<2x32xf32>
    %205 = arith.addf %204, %203 : vector<2x32xf32>
    %206 = arith.divf %204, %205 : vector<2x32xf32>
    %207 = vector.extract_strided_slice %190 {offsets = [0, 64], sizes = [2, 32], strides = [1, 1]} : vector<2x96xf32> to vector<2x32xf32>
    %208 = vector.extract_strided_slice %187 {offsets = [0, 64], sizes = [2, 32], strides = [1, 1]} : vector<2x96xf32> to vector<2x32xf32>
    %209 = arith.mulf %198, %208 : vector<2x32xf32>
    %210 = arith.addf %207, %209 : vector<2x32xf32>
    %211 = math.tanh %210 : vector<2x32xf32>
    %cst_57 = arith.constant 1.000000e+00 : f32
    %212 = vector.broadcast %cst_57 : f32 to vector<2x32xf32>
    %213 = arith.subf %212, %206 : vector<2x32xf32>
    %214 = arith.mulf %213, %211 : vector<2x32xf32>
    %215 = arith.mulf %206, %181 : vector<2x32xf32>
    %216 = arith.addf %214, %215 : vector<2x32xf32>
    %c2_i32_58 = arith.constant 2 : i32
    %217 = arith.muli %c5_i32, %c2_i32_58 : i32
    %218 = arith.index_cast %217 : i32 to index
    %c0_59 = arith.constant 0 : index
    %219 = vector.load %arg13[%218, %c0_59] : memref<16x32xf32, #tpu.memory_space<vmem>>, vector<2x32xf32>
    tpu.vector_store %arg13[%218, %c0_59], %216 {strides = array<i32>} : memref<16x32xf32, #tpu.memory_space<vmem>>, vector<2x32xf32>,
    %c6_i32 = arith.constant 6 : i32
    %cst_60 = arith.constant dense<0.000000e+00> : vector<2x96xf32>
    %220 = tpu.matmul %216, %7, %cst_60 {dimension_numbers = #tpu.dot_dimension_numbers<[1], [0], [0], [1], [0, 0, 1, 1], [], []>} : vector<2x32xf32>, vector<32x96xf32>, vector<2x96xf32> -> vector<2x96xf32>
    %221 = vector.broadcast %8 : vector<1x96xf32> to vector<2x96xf32>
    %222 = arith.addf %220, %221 : vector<2x96xf32>
    %c2_i32_61 = arith.constant 2 : i32
    %223 = arith.muli %c6_i32, %c2_i32_61 : i32
    %224 = arith.index_cast %223 : i32 to index
    %c0_62 = arith.constant 0 : index
    %225 = vector.load %arg12[%224, %c0_62] : memref<16x96xf32, #tpu.memory_space<vmem>>, vector<2x96xf32>
    %226 = vector.extract_strided_slice %225 {offsets = [0, 0], sizes = [2, 32], strides = [1, 1]} : vector<2x96xf32> to vector<2x32xf32>
    %227 = vector.extract_strided_slice %222 {offsets = [0, 0], sizes = [2, 32], strides = [1, 1]} : vector<2x96xf32> to vector<2x32xf32>
    %228 = arith.addf %226, %227 : vector<2x32xf32>
    %229 = arith.negf %228 : vector<2x32xf32>
    %230 = math.exp %229 : vector<2x32xf32>
    %cst_63 = arith.constant 1.000000e+00 : f32
    %231 = vector.broadcast %cst_63 : f32 to vector<2x32xf32>
    %232 = arith.addf %231, %230 : vector<2x32xf32>
    %233 = arith.divf %231, %232 : vector<2x32xf32>
    %234 = vector.extract_strided_slice %225 {offsets = [0, 32], sizes = [2, 32], strides = [1, 1]} : vector<2x96xf32> to vector<2x32xf32>
    %235 = vector.extract_strided_slice %222 {offsets = [0, 32], sizes = [2, 32], strides = [1, 1]} : vector<2x96xf32> to vector<2x32xf32>
    %236 = arith.addf %234, %235 : vector<2x32xf32>
    %237 = arith.negf %236 : vector<2x32xf32>
    %238 = math.exp %237 : vector<2x32xf32>
    %cst_64 = arith.constant 1.000000e+00 : f32
    %239 = vector.broadcast %cst_64 : f32 to vector<2x32xf32>
    %240 = arith.addf %239, %238 : vector<2x32xf32>
    %241 = arith.divf %239, %240 : vector<2x32xf32>
    %242 = vector.extract_strided_slice %225 {offsets = [0, 64], sizes = [2, 32], strides = [1, 1]} : vector<2x96xf32> to vector<2x32xf32>
    %243 = vector.extract_strided_slice %222 {offsets = [0, 64], sizes = [2, 32], strides = [1, 1]} : vector<2x96xf32> to vector<2x32xf32>
    %244 = arith.mulf %233, %243 : vector<2x32xf32>
    %245 = arith.addf %242, %244 : vector<2x32xf32>
    %246 = math.tanh %245 : vector<2x32xf32>
    %cst_65 = arith.constant 1.000000e+00 : f32
    %247 = vector.broadcast %cst_65 : f32 to vector<2x32xf32>
    %248 = arith.subf %247, %241 : vector<2x32xf32>
    %249 = arith.mulf %248, %246 : vector<2x32xf32>
    %250 = arith.mulf %241, %216 : vector<2x32xf32>
    %251 = arith.addf %249, %250 : vector<2x32xf32>
    %c2_i32_66 = arith.constant 2 : i32
    %252 = arith.muli %c6_i32, %c2_i32_66 : i32
    %253 = arith.index_cast %252 : i32 to index
    %c0_67 = arith.constant 0 : index
    %254 = vector.load %arg13[%253, %c0_67] : memref<16x32xf32, #tpu.memory_space<vmem>>, vector<2x32xf32>
    tpu.vector_store %arg13[%253, %c0_67], %251 {strides = array<i32>} : memref<16x32xf32, #tpu.memory_space<vmem>>, vector<2x32xf32>,
    %c7_i32 = arith.constant 7 : i32
    %cst_68 = arith.constant dense<0.000000e+00> : vector<2x96xf32>
    %255 = tpu.matmul %251, %7, %cst_68 {dimension_numbers = #tpu.dot_dimension_numbers<[1], [0], [0], [1], [0, 0, 1, 1], [], []>} : vector<2x32xf32>, vector<32x96xf32>, vector<2x96xf32> -> vector<2x96xf32>
    %256 = vector.broadcast %8 : vector<1x96xf32> to vector<2x96xf32>
    %257 = arith.addf %255, %256 : vector<2x96xf32>
    %c2_i32_69 = arith.constant 2 : i32
    %258 = arith.muli %c7_i32, %c2_i32_69 : i32
    %259 = arith.index_cast %258 : i32 to index
    %c0_70 = arith.constant 0 : index
    %260 = vector.load %arg12[%259, %c0_70] : memref<16x96xf32, #tpu.memory_space<vmem>>, vector<2x96xf32>
    %261 = vector.extract_strided_slice %260 {offsets = [0, 0], sizes = [2, 32], strides = [1, 1]} : vector<2x96xf32> to vector<2x32xf32>
    %262 = vector.extract_strided_slice %257 {offsets = [0, 0], sizes = [2, 32], strides = [1, 1]} : vector<2x96xf32> to vector<2x32xf32>
    %263 = arith.addf %261, %262 : vector<2x32xf32>
    %264 = arith.negf %263 : vector<2x32xf32>
    %265 = math.exp %264 : vector<2x32xf32>
    %cst_71 = arith.constant 1.000000e+00 : f32
    %266 = vector.broadcast %cst_71 : f32 to vector<2x32xf32>
    %267 = arith.addf %266, %265 : vector<2x32xf32>
    %268 = arith.divf %266, %267 : vector<2x32xf32>
    %269 = vector.extract_strided_slice %260 {offsets = [0, 32], sizes = [2, 32], strides = [1, 1]} : vector<2x96xf32> to vector<2x32xf32>
    %270 = vector.extract_strided_slice %257 {offsets = [0, 32], sizes = [2, 32], strides = [1, 1]} : vector<2x96xf32> to vector<2x32xf32>
    %271 = arith.addf %269, %270 : vector<2x32xf32>
    %272 = arith.negf %271 : vector<2x32xf32>
    %273 = math.exp %272 : vector<2x32xf32>
    %cst_72 = arith.constant 1.000000e+00 : f32
    %274 = vector.broadcast %cst_72 : f32 to vector<2x32xf32>
    %275 = arith.addf %274, %273 : vector<2x32xf32>
    %276 = arith.divf %274, %275 : vector<2x32xf32>
    %277 = vector.extract_strided_slice %260 {offsets = [0, 64], sizes = [2, 32], strides = [1, 1]} : vector<2x96xf32> to vector<2x32xf32>
    %278 = vector.extract_strided_slice %257 {offsets = [0, 64], sizes = [2, 32], strides = [1, 1]} : vector<2x96xf32> to vector<2x32xf32>
    %279 = arith.mulf %268, %278 : vector<2x32xf32>
    %280 = arith.addf %277, %279 : vector<2x32xf32>
    %281 = math.tanh %280 : vector<2x32xf32>
    %cst_73 = arith.constant 1.000000e+00 : f32
    %282 = vector.broadcast %cst_73 : f32 to vector<2x32xf32>
    %283 = arith.subf %282, %276 : vector<2x32xf32>
    %284 = arith.mulf %283, %281 : vector<2x32xf32>
    %285 = arith.mulf %276, %251 : vector<2x32xf32>
    %286 = arith.addf %284, %285 : vector<2x32xf32>
    %c2_i32_74 = arith.constant 2 : i32
    %287 = arith.muli %c7_i32, %c2_i32_74 : i32
    %288 = arith.index_cast %287 : i32 to index
    %c0_75 = arith.constant 0 : index
    %289 = vector.load %arg13[%288, %c0_75] : memref<16x32xf32, #tpu.memory_space<vmem>>, vector<2x32xf32>
    tpu.vector_store %arg13[%288, %c0_75], %286 {strides = array<i32>} : memref<16x32xf32, #tpu.memory_space<vmem>>, vector<2x32xf32>,
    %c8_i32 = arith.constant 8 : i32
    %c0_76 = arith.constant 0 : index
    %c0_77 = arith.constant 0 : index
    %290 = vector.load %arg13[%c0_76, %c0_77] : memref<16x32xf32, #tpu.memory_space<vmem>>, vector<16x32xf32>
    %c0_78 = arith.constant 0 : index
    %c0_79 = arith.constant 0 : index
    %291 = vector.load %arg5[%c0_78, %c0_79] : memref<32x96xf32, #tpu.memory_space<vmem>>, vector<32x96xf32>
    %cst_80 = arith.constant dense<0.000000e+00> : vector<16x96xf32>
    %292 = tpu.matmul %290, %291, %cst_80 {dimension_numbers = #tpu.dot_dimension_numbers<[1], [0], [0], [1], [0, 0, 1, 1], [], []>} : vector<16x32xf32>, vector<32x96xf32>, vector<16x96xf32> -> vector<16x96xf32>
    %c0_81 = arith.constant 0 : index
    %c0_82 = arith.constant 0 : index
    %293 = vector.load %arg7[%c0_81, %c0_82] : memref<1x96xf32, #tpu.memory_space<vmem>>, vector<1x96xf32>
    %294 = vector.broadcast %293 : vector<1x96xf32> to vector<16x96xf32>
    %295 = arith.addf %292, %294 : vector<16x96xf32>
    %c0_83 = arith.constant 0 : index
    %c0_84 = arith.constant 0 : index
    %296 = vector.load %arg12[%c0_83, %c0_84] : memref<16x96xf32, #tpu.memory_space<vmem>>, vector<16x96xf32>
    tpu.vector_store %arg12[%c0_83, %c0_84], %295 {strides = array<i32>} : memref<16x96xf32, #tpu.memory_space<vmem>>, vector<16x96xf32>,
    %c0_85 = arith.constant 0 : index
    %c0_86 = arith.constant 0 : index
    %297 = vector.load %arg6[%c0_85, %c0_86] : memref<32x96xf32, #tpu.memory_space<vmem>>, vector<32x96xf32>
    %c0_87 = arith.constant 0 : index
    %c0_88 = arith.constant 0 : index
    %298 = vector.load %arg8[%c0_87, %c0_88] : memref<1x96xf32, #tpu.memory_space<vmem>>, vector<1x96xf32>
    %cst_89 = arith.constant 0.000000e+00 : f32
    %299 = vector.broadcast %cst_89 : f32 to vector<2x32xf32>
    %c0_i32_90 = arith.constant 0 : i32
    %cst_91 = arith.constant dense<0.000000e+00> : vector<2x96xf32>
    %300 = tpu.matmul %299, %297, %cst_91 {dimension_numbers = #tpu.dot_dimension_numbers<[1], [0], [0], [1], [0, 0, 1, 1], [], []>} : vector<2x32xf32>, vector<32x96xf32>, vector<2x96xf32> -> vector<2x96xf32>
    %301 = vector.broadcast %298 : vector<1x96xf32> to vector<2x96xf32>
    %302 = arith.addf %300, %301 : vector<2x96xf32>
    %c2_i32_92 = arith.constant 2 : i32
    %303 = arith.muli %c0_i32_90, %c2_i32_92 : i32
    %304 = arith.index_cast %303 : i32 to index
    %c0_93 = arith.constant 0 : index
    %305 = vector.load %arg12[%304, %c0_93] : memref<16x96xf32, #tpu.memory_space<vmem>>, vector<2x96xf32>
    %306 = vector.extract_strided_slice %305 {offsets = [0, 0], sizes = [2, 32], strides = [1, 1]} : vector<2x96xf32> to vector<2x32xf32>
    %307 = vector.extract_strided_slice %302 {offsets = [0, 0], sizes = [2, 32], strides = [1, 1]} : vector<2x96xf32> to vector<2x32xf32>
    %308 = arith.addf %306, %307 : vector<2x32xf32>
    %309 = arith.negf %308 : vector<2x32xf32>
    %310 = math.exp %309 : vector<2x32xf32>
    %cst_94 = arith.constant 1.000000e+00 : f32
    %311 = vector.broadcast %cst_94 : f32 to vector<2x32xf32>
    %312 = arith.addf %311, %310 : vector<2x32xf32>
    %313 = arith.divf %311, %312 : vector<2x32xf32>
    %314 = vector.extract_strided_slice %305 {offsets = [0, 32], sizes = [2, 32], strides = [1, 1]} : vector<2x96xf32> to vector<2x32xf32>
    %315 = vector.extract_strided_slice %302 {offsets = [0, 32], sizes = [2, 32], strides = [1, 1]} : vector<2x96xf32> to vector<2x32xf32>
    %316 = arith.addf %314, %315 : vector<2x32xf32>
    %317 = arith.negf %316 : vector<2x32xf32>
    %318 = math.exp %317 : vector<2x32xf32>
    %cst_95 = arith.constant 1.000000e+00 : f32
    %319 = vector.broadcast %cst_95 : f32 to vector<2x32xf32>
    %320 = arith.addf %319, %318 : vector<2x32xf32>
    %321 = arith.divf %319, %320 : vector<2x32xf32>
    %322 = vector.extract_strided_slice %305 {offsets = [0, 64], sizes = [2, 32], strides = [1, 1]} : vector<2x96xf32> to vector<2x32xf32>
    %323 = vector.extract_strided_slice %302 {offsets = [0, 64], sizes = [2, 32], strides = [1, 1]} : vector<2x96xf32> to vector<2x32xf32>
    %324 = arith.mulf %313, %323 : vector<2x32xf32>
    %325 = arith.addf %322, %324 : vector<2x32xf32>
    %326 = math.tanh %325 : vector<2x32xf32>
    %cst_96 = arith.constant 1.000000e+00 : f32
    %327 = vector.broadcast %cst_96 : f32 to vector<2x32xf32>
    %328 = arith.subf %327, %321 : vector<2x32xf32>
    %329 = arith.mulf %328, %326 : vector<2x32xf32>
    %330 = arith.mulf %321, %299 : vector<2x32xf32>
    %331 = arith.addf %329, %330 : vector<2x32xf32>
    %c1_i32_97 = arith.constant 1 : i32
    %cst_98 = arith.constant dense<0.000000e+00> : vector<2x96xf32>
    %332 = tpu.matmul %331, %297, %cst_98 {dimension_numbers = #tpu.dot_dimension_numbers<[1], [0], [0], [1], [0, 0, 1, 1], [], []>} : vector<2x32xf32>, vector<32x96xf32>, vector<2x96xf32> -> vector<2x96xf32>
    %333 = vector.broadcast %298 : vector<1x96xf32> to vector<2x96xf32>
    %334 = arith.addf %332, %333 : vector<2x96xf32>
    %c2_i32_99 = arith.constant 2 : i32
    %335 = arith.muli %c1_i32_97, %c2_i32_99 : i32
    %336 = arith.index_cast %335 : i32 to index
    %c0_100 = arith.constant 0 : index
    %337 = vector.load %arg12[%336, %c0_100] : memref<16x96xf32, #tpu.memory_space<vmem>>, vector<2x96xf32>
    %338 = vector.extract_strided_slice %337 {offsets = [0, 0], sizes = [2, 32], strides = [1, 1]} : vector<2x96xf32> to vector<2x32xf32>
    %339 = vector.extract_strided_slice %334 {offsets = [0, 0], sizes = [2, 32], strides = [1, 1]} : vector<2x96xf32> to vector<2x32xf32>
    %340 = arith.addf %338, %339 : vector<2x32xf32>
    %341 = arith.negf %340 : vector<2x32xf32>
    %342 = math.exp %341 : vector<2x32xf32>
    %cst_101 = arith.constant 1.000000e+00 : f32
    %343 = vector.broadcast %cst_101 : f32 to vector<2x32xf32>
    %344 = arith.addf %343, %342 : vector<2x32xf32>
    %345 = arith.divf %343, %344 : vector<2x32xf32>
    %346 = vector.extract_strided_slice %337 {offsets = [0, 32], sizes = [2, 32], strides = [1, 1]} : vector<2x96xf32> to vector<2x32xf32>
    %347 = vector.extract_strided_slice %334 {offsets = [0, 32], sizes = [2, 32], strides = [1, 1]} : vector<2x96xf32> to vector<2x32xf32>
    %348 = arith.addf %346, %347 : vector<2x32xf32>
    %349 = arith.negf %348 : vector<2x32xf32>
    %350 = math.exp %349 : vector<2x32xf32>
    %cst_102 = arith.constant 1.000000e+00 : f32
    %351 = vector.broadcast %cst_102 : f32 to vector<2x32xf32>
    %352 = arith.addf %351, %350 : vector<2x32xf32>
    %353 = arith.divf %351, %352 : vector<2x32xf32>
    %354 = vector.extract_strided_slice %337 {offsets = [0, 64], sizes = [2, 32], strides = [1, 1]} : vector<2x96xf32> to vector<2x32xf32>
    %355 = vector.extract_strided_slice %334 {offsets = [0, 64], sizes = [2, 32], strides = [1, 1]} : vector<2x96xf32> to vector<2x32xf32>
    %356 = arith.mulf %345, %355 : vector<2x32xf32>
    %357 = arith.addf %354, %356 : vector<2x32xf32>
    %358 = math.tanh %357 : vector<2x32xf32>
    %cst_103 = arith.constant 1.000000e+00 : f32
    %359 = vector.broadcast %cst_103 : f32 to vector<2x32xf32>
    %360 = arith.subf %359, %353 : vector<2x32xf32>
    %361 = arith.mulf %360, %358 : vector<2x32xf32>
    %362 = arith.mulf %353, %331 : vector<2x32xf32>
    %363 = arith.addf %361, %362 : vector<2x32xf32>
    %c2_i32_104 = arith.constant 2 : i32
    %cst_105 = arith.constant dense<0.000000e+00> : vector<2x96xf32>
    %364 = tpu.matmul %363, %297, %cst_105 {dimension_numbers = #tpu.dot_dimension_numbers<[1], [0], [0], [1], [0, 0, 1, 1], [], []>} : vector<2x32xf32>, vector<32x96xf32>, vector<2x96xf32> -> vector<2x96xf32>
    %365 = vector.broadcast %298 : vector<1x96xf32> to vector<2x96xf32>
    %366 = arith.addf %364, %365 : vector<2x96xf32>
    %c2_i32_106 = arith.constant 2 : i32
    %367 = arith.muli %c2_i32_104, %c2_i32_106 : i32
    %368 = arith.index_cast %367 : i32 to index
    %c0_107 = arith.constant 0 : index
    %369 = vector.load %arg12[%368, %c0_107] : memref<16x96xf32, #tpu.memory_space<vmem>>, vector<2x96xf32>
    %370 = vector.extract_strided_slice %369 {offsets = [0, 0], sizes = [2, 32], strides = [1, 1]} : vector<2x96xf32> to vector<2x32xf32>
    %371 = vector.extract_strided_slice %366 {offsets = [0, 0], sizes = [2, 32], strides = [1, 1]} : vector<2x96xf32> to vector<2x32xf32>
    %372 = arith.addf %370, %371 : vector<2x32xf32>
    %373 = arith.negf %372 : vector<2x32xf32>
    %374 = math.exp %373 : vector<2x32xf32>
    %cst_108 = arith.constant 1.000000e+00 : f32
    %375 = vector.broadcast %cst_108 : f32 to vector<2x32xf32>
    %376 = arith.addf %375, %374 : vector<2x32xf32>
    %377 = arith.divf %375, %376 : vector<2x32xf32>
    %378 = vector.extract_strided_slice %369 {offsets = [0, 32], sizes = [2, 32], strides = [1, 1]} : vector<2x96xf32> to vector<2x32xf32>
    %379 = vector.extract_strided_slice %366 {offsets = [0, 32], sizes = [2, 32], strides = [1, 1]} : vector<2x96xf32> to vector<2x32xf32>
    %380 = arith.addf %378, %379 : vector<2x32xf32>
    %381 = arith.negf %380 : vector<2x32xf32>
    %382 = math.exp %381 : vector<2x32xf32>
    %cst_109 = arith.constant 1.000000e+00 : f32
    %383 = vector.broadcast %cst_109 : f32 to vector<2x32xf32>
    %384 = arith.addf %383, %382 : vector<2x32xf32>
    %385 = arith.divf %383, %384 : vector<2x32xf32>
    %386 = vector.extract_strided_slice %369 {offsets = [0, 64], sizes = [2, 32], strides = [1, 1]} : vector<2x96xf32> to vector<2x32xf32>
    %387 = vector.extract_strided_slice %366 {offsets = [0, 64], sizes = [2, 32], strides = [1, 1]} : vector<2x96xf32> to vector<2x32xf32>
    %388 = arith.mulf %377, %387 : vector<2x32xf32>
    %389 = arith.addf %386, %388 : vector<2x32xf32>
    %390 = math.tanh %389 : vector<2x32xf32>
    %cst_110 = arith.constant 1.000000e+00 : f32
    %391 = vector.broadcast %cst_110 : f32 to vector<2x32xf32>
    %392 = arith.subf %391, %385 : vector<2x32xf32>
    %393 = arith.mulf %392, %390 : vector<2x32xf32>
    %394 = arith.mulf %385, %363 : vector<2x32xf32>
    %395 = arith.addf %393, %394 : vector<2x32xf32>
    %c3_i32_111 = arith.constant 3 : i32
    %cst_112 = arith.constant dense<0.000000e+00> : vector<2x96xf32>
    %396 = tpu.matmul %395, %297, %cst_112 {dimension_numbers = #tpu.dot_dimension_numbers<[1], [0], [0], [1], [0, 0, 1, 1], [], []>} : vector<2x32xf32>, vector<32x96xf32>, vector<2x96xf32> -> vector<2x96xf32>
    %397 = vector.broadcast %298 : vector<1x96xf32> to vector<2x96xf32>
    %398 = arith.addf %396, %397 : vector<2x96xf32>
    %c2_i32_113 = arith.constant 2 : i32
    %399 = arith.muli %c3_i32_111, %c2_i32_113 : i32
    %400 = arith.index_cast %399 : i32 to index
    %c0_114 = arith.constant 0 : index
    %401 = vector.load %arg12[%400, %c0_114] : memref<16x96xf32, #tpu.memory_space<vmem>>, vector<2x96xf32>
    %402 = vector.extract_strided_slice %401 {offsets = [0, 0], sizes = [2, 32], strides = [1, 1]} : vector<2x96xf32> to vector<2x32xf32>
    %403 = vector.extract_strided_slice %398 {offsets = [0, 0], sizes = [2, 32], strides = [1, 1]} : vector<2x96xf32> to vector<2x32xf32>
    %404 = arith.addf %402, %403 : vector<2x32xf32>
    %405 = arith.negf %404 : vector<2x32xf32>
    %406 = math.exp %405 : vector<2x32xf32>
    %cst_115 = arith.constant 1.000000e+00 : f32
    %407 = vector.broadcast %cst_115 : f32 to vector<2x32xf32>
    %408 = arith.addf %407, %406 : vector<2x32xf32>
    %409 = arith.divf %407, %408 : vector<2x32xf32>
    %410 = vector.extract_strided_slice %401 {offsets = [0, 32], sizes = [2, 32], strides = [1, 1]} : vector<2x96xf32> to vector<2x32xf32>
    %411 = vector.extract_strided_slice %398 {offsets = [0, 32], sizes = [2, 32], strides = [1, 1]} : vector<2x96xf32> to vector<2x32xf32>
    %412 = arith.addf %410, %411 : vector<2x32xf32>
    %413 = arith.negf %412 : vector<2x32xf32>
    %414 = math.exp %413 : vector<2x32xf32>
    %cst_116 = arith.constant 1.000000e+00 : f32
    %415 = vector.broadcast %cst_116 : f32 to vector<2x32xf32>
    %416 = arith.addf %415, %414 : vector<2x32xf32>
    %417 = arith.divf %415, %416 : vector<2x32xf32>
    %418 = vector.extract_strided_slice %401 {offsets = [0, 64], sizes = [2, 32], strides = [1, 1]} : vector<2x96xf32> to vector<2x32xf32>
    %419 = vector.extract_strided_slice %398 {offsets = [0, 64], sizes = [2, 32], strides = [1, 1]} : vector<2x96xf32> to vector<2x32xf32>
    %420 = arith.mulf %409, %419 : vector<2x32xf32>
    %421 = arith.addf %418, %420 : vector<2x32xf32>
    %422 = math.tanh %421 : vector<2x32xf32>
    %cst_117 = arith.constant 1.000000e+00 : f32
    %423 = vector.broadcast %cst_117 : f32 to vector<2x32xf32>
    %424 = arith.subf %423, %417 : vector<2x32xf32>
    %425 = arith.mulf %424, %422 : vector<2x32xf32>
    %426 = arith.mulf %417, %395 : vector<2x32xf32>
    %427 = arith.addf %425, %426 : vector<2x32xf32>
    %c4_i32_118 = arith.constant 4 : i32
    %cst_119 = arith.constant dense<0.000000e+00> : vector<2x96xf32>
    %428 = tpu.matmul %427, %297, %cst_119 {dimension_numbers = #tpu.dot_dimension_numbers<[1], [0], [0], [1], [0, 0, 1, 1], [], []>} : vector<2x32xf32>, vector<32x96xf32>, vector<2x96xf32> -> vector<2x96xf32>
    %429 = vector.broadcast %298 : vector<1x96xf32> to vector<2x96xf32>
    %430 = arith.addf %428, %429 : vector<2x96xf32>
    %c2_i32_120 = arith.constant 2 : i32
    %431 = arith.muli %c4_i32_118, %c2_i32_120 : i32
    %432 = arith.index_cast %431 : i32 to index
    %c0_121 = arith.constant 0 : index
    %433 = vector.load %arg12[%432, %c0_121] : memref<16x96xf32, #tpu.memory_space<vmem>>, vector<2x96xf32>
    %434 = vector.extract_strided_slice %433 {offsets = [0, 0], sizes = [2, 32], strides = [1, 1]} : vector<2x96xf32> to vector<2x32xf32>
    %435 = vector.extract_strided_slice %430 {offsets = [0, 0], sizes = [2, 32], strides = [1, 1]} : vector<2x96xf32> to vector<2x32xf32>
    %436 = arith.addf %434, %435 : vector<2x32xf32>
    %437 = arith.negf %436 : vector<2x32xf32>
    %438 = math.exp %437 : vector<2x32xf32>
    %cst_122 = arith.constant 1.000000e+00 : f32
    %439 = vector.broadcast %cst_122 : f32 to vector<2x32xf32>
    %440 = arith.addf %439, %438 : vector<2x32xf32>
    %441 = arith.divf %439, %440 : vector<2x32xf32>
    %442 = vector.extract_strided_slice %433 {offsets = [0, 32], sizes = [2, 32], strides = [1, 1]} : vector<2x96xf32> to vector<2x32xf32>
    %443 = vector.extract_strided_slice %430 {offsets = [0, 32], sizes = [2, 32], strides = [1, 1]} : vector<2x96xf32> to vector<2x32xf32>
    %444 = arith.addf %442, %443 : vector<2x32xf32>
    %445 = arith.negf %444 : vector<2x32xf32>
    %446 = math.exp %445 : vector<2x32xf32>
    %cst_123 = arith.constant 1.000000e+00 : f32
    %447 = vector.broadcast %cst_123 : f32 to vector<2x32xf32>
    %448 = arith.addf %447, %446 : vector<2x32xf32>
    %449 = arith.divf %447, %448 : vector<2x32xf32>
    %450 = vector.extract_strided_slice %433 {offsets = [0, 64], sizes = [2, 32], strides = [1, 1]} : vector<2x96xf32> to vector<2x32xf32>
    %451 = vector.extract_strided_slice %430 {offsets = [0, 64], sizes = [2, 32], strides = [1, 1]} : vector<2x96xf32> to vector<2x32xf32>
    %452 = arith.mulf %441, %451 : vector<2x32xf32>
    %453 = arith.addf %450, %452 : vector<2x32xf32>
    %454 = math.tanh %453 : vector<2x32xf32>
    %cst_124 = arith.constant 1.000000e+00 : f32
    %455 = vector.broadcast %cst_124 : f32 to vector<2x32xf32>
    %456 = arith.subf %455, %449 : vector<2x32xf32>
    %457 = arith.mulf %456, %454 : vector<2x32xf32>
    %458 = arith.mulf %449, %427 : vector<2x32xf32>
    %459 = arith.addf %457, %458 : vector<2x32xf32>
    %c5_i32_125 = arith.constant 5 : i32
    %cst_126 = arith.constant dense<0.000000e+00> : vector<2x96xf32>
    %460 = tpu.matmul %459, %297, %cst_126 {dimension_numbers = #tpu.dot_dimension_numbers<[1], [0], [0], [1], [0, 0, 1, 1], [], []>} : vector<2x32xf32>, vector<32x96xf32>, vector<2x96xf32> -> vector<2x96xf32>
    %461 = vector.broadcast %298 : vector<1x96xf32> to vector<2x96xf32>
    %462 = arith.addf %460, %461 : vector<2x96xf32>
    %c2_i32_127 = arith.constant 2 : i32
    %463 = arith.muli %c5_i32_125, %c2_i32_127 : i32
    %464 = arith.index_cast %463 : i32 to index
    %c0_128 = arith.constant 0 : index
    %465 = vector.load %arg12[%464, %c0_128] : memref<16x96xf32, #tpu.memory_space<vmem>>, vector<2x96xf32>
    %466 = vector.extract_strided_slice %465 {offsets = [0, 0], sizes = [2, 32], strides = [1, 1]} : vector<2x96xf32> to vector<2x32xf32>
    %467 = vector.extract_strided_slice %462 {offsets = [0, 0], sizes = [2, 32], strides = [1, 1]} : vector<2x96xf32> to vector<2x32xf32>
    %468 = arith.addf %466, %467 : vector<2x32xf32>
    %469 = arith.negf %468 : vector<2x32xf32>
    %470 = math.exp %469 : vector<2x32xf32>
    %cst_129 = arith.constant 1.000000e+00 : f32
    %471 = vector.broadcast %cst_129 : f32 to vector<2x32xf32>
    %472 = arith.addf %471, %470 : vector<2x32xf32>
    %473 = arith.divf %471, %472 : vector<2x32xf32>
    %474 = vector.extract_strided_slice %465 {offsets = [0, 32], sizes = [2, 32], strides = [1, 1]} : vector<2x96xf32> to vector<2x32xf32>
    %475 = vector.extract_strided_slice %462 {offsets = [0, 32], sizes = [2, 32], strides = [1, 1]} : vector<2x96xf32> to vector<2x32xf32>
    %476 = arith.addf %474, %475 : vector<2x32xf32>
    %477 = arith.negf %476 : vector<2x32xf32>
    %478 = math.exp %477 : vector<2x32xf32>
    %cst_130 = arith.constant 1.000000e+00 : f32
    %479 = vector.broadcast %cst_130 : f32 to vector<2x32xf32>
    %480 = arith.addf %479, %478 : vector<2x32xf32>
    %481 = arith.divf %479, %480 : vector<2x32xf32>
    %482 = vector.extract_strided_slice %465 {offsets = [0, 64], sizes = [2, 32], strides = [1, 1]} : vector<2x96xf32> to vector<2x32xf32>
    %483 = vector.extract_strided_slice %462 {offsets = [0, 64], sizes = [2, 32], strides = [1, 1]} : vector<2x96xf32> to vector<2x32xf32>
    %484 = arith.mulf %473, %483 : vector<2x32xf32>
    %485 = arith.addf %482, %484 : vector<2x32xf32>
    %486 = math.tanh %485 : vector<2x32xf32>
    %cst_131 = arith.constant 1.000000e+00 : f32
    %487 = vector.broadcast %cst_131 : f32 to vector<2x32xf32>
    %488 = arith.subf %487, %481 : vector<2x32xf32>
    %489 = arith.mulf %488, %486 : vector<2x32xf32>
    %490 = arith.mulf %481, %459 : vector<2x32xf32>
    %491 = arith.addf %489, %490 : vector<2x32xf32>
    %c6_i32_132 = arith.constant 6 : i32
    %cst_133 = arith.constant dense<0.000000e+00> : vector<2x96xf32>
    %492 = tpu.matmul %491, %297, %cst_133 {dimension_numbers = #tpu.dot_dimension_numbers<[1], [0], [0], [1], [0, 0, 1, 1], [], []>} : vector<2x32xf32>, vector<32x96xf32>, vector<2x96xf32> -> vector<2x96xf32>
    %493 = vector.broadcast %298 : vector<1x96xf32> to vector<2x96xf32>
    %494 = arith.addf %492, %493 : vector<2x96xf32>
    %c2_i32_134 = arith.constant 2 : i32
    %495 = arith.muli %c6_i32_132, %c2_i32_134 : i32
    %496 = arith.index_cast %495 : i32 to index
    %c0_135 = arith.constant 0 : index
    %497 = vector.load %arg12[%496, %c0_135] : memref<16x96xf32, #tpu.memory_space<vmem>>, vector<2x96xf32>
    %498 = vector.extract_strided_slice %497 {offsets = [0, 0], sizes = [2, 32], strides = [1, 1]} : vector<2x96xf32> to vector<2x32xf32>
    %499 = vector.extract_strided_slice %494 {offsets = [0, 0], sizes = [2, 32], strides = [1, 1]} : vector<2x96xf32> to vector<2x32xf32>
    %500 = arith.addf %498, %499 : vector<2x32xf32>
    %501 = arith.negf %500 : vector<2x32xf32>
    %502 = math.exp %501 : vector<2x32xf32>
    %cst_136 = arith.constant 1.000000e+00 : f32
    %503 = vector.broadcast %cst_136 : f32 to vector<2x32xf32>
    %504 = arith.addf %503, %502 : vector<2x32xf32>
    %505 = arith.divf %503, %504 : vector<2x32xf32>
    %506 = vector.extract_strided_slice %497 {offsets = [0, 32], sizes = [2, 32], strides = [1, 1]} : vector<2x96xf32> to vector<2x32xf32>
    %507 = vector.extract_strided_slice %494 {offsets = [0, 32], sizes = [2, 32], strides = [1, 1]} : vector<2x96xf32> to vector<2x32xf32>
    %508 = arith.addf %506, %507 : vector<2x32xf32>
    %509 = arith.negf %508 : vector<2x32xf32>
    %510 = math.exp %509 : vector<2x32xf32>
    %cst_137 = arith.constant 1.000000e+00 : f32
    %511 = vector.broadcast %cst_137 : f32 to vector<2x32xf32>
    %512 = arith.addf %511, %510 : vector<2x32xf32>
    %513 = arith.divf %511, %512 : vector<2x32xf32>
    %514 = vector.extract_strided_slice %497 {offsets = [0, 64], sizes = [2, 32], strides = [1, 1]} : vector<2x96xf32> to vector<2x32xf32>
    %515 = vector.extract_strided_slice %494 {offsets = [0, 64], sizes = [2, 32], strides = [1, 1]} : vector<2x96xf32> to vector<2x32xf32>
    %516 = arith.mulf %505, %515 : vector<2x32xf32>
    %517 = arith.addf %514, %516 : vector<2x32xf32>
    %518 = math.tanh %517 : vector<2x32xf32>
    %cst_138 = arith.constant 1.000000e+00 : f32
    %519 = vector.broadcast %cst_138 : f32 to vector<2x32xf32>
    %520 = arith.subf %519, %513 : vector<2x32xf32>
    %521 = arith.mulf %520, %518 : vector<2x32xf32>
    %522 = arith.mulf %513, %491 : vector<2x32xf32>
    %523 = arith.addf %521, %522 : vector<2x32xf32>
    %c7_i32_139 = arith.constant 7 : i32
    %cst_140 = arith.constant dense<0.000000e+00> : vector<2x96xf32>
    %524 = tpu.matmul %523, %297, %cst_140 {dimension_numbers = #tpu.dot_dimension_numbers<[1], [0], [0], [1], [0, 0, 1, 1], [], []>} : vector<2x32xf32>, vector<32x96xf32>, vector<2x96xf32> -> vector<2x96xf32>
    %525 = vector.broadcast %298 : vector<1x96xf32> to vector<2x96xf32>
    %526 = arith.addf %524, %525 : vector<2x96xf32>
    %c2_i32_141 = arith.constant 2 : i32
    %527 = arith.muli %c7_i32_139, %c2_i32_141 : i32
    %528 = arith.index_cast %527 : i32 to index
    %c0_142 = arith.constant 0 : index
    %529 = vector.load %arg12[%528, %c0_142] : memref<16x96xf32, #tpu.memory_space<vmem>>, vector<2x96xf32>
    %530 = vector.extract_strided_slice %529 {offsets = [0, 0], sizes = [2, 32], strides = [1, 1]} : vector<2x96xf32> to vector<2x32xf32>
    %531 = vector.extract_strided_slice %526 {offsets = [0, 0], sizes = [2, 32], strides = [1, 1]} : vector<2x96xf32> to vector<2x32xf32>
    %532 = arith.addf %530, %531 : vector<2x32xf32>
    %533 = arith.negf %532 : vector<2x32xf32>
    %534 = math.exp %533 : vector<2x32xf32>
    %cst_143 = arith.constant 1.000000e+00 : f32
    %535 = vector.broadcast %cst_143 : f32 to vector<2x32xf32>
    %536 = arith.addf %535, %534 : vector<2x32xf32>
    %537 = arith.divf %535, %536 : vector<2x32xf32>
    %538 = vector.extract_strided_slice %529 {offsets = [0, 32], sizes = [2, 32], strides = [1, 1]} : vector<2x96xf32> to vector<2x32xf32>
    %539 = vector.extract_strided_slice %526 {offsets = [0, 32], sizes = [2, 32], strides = [1, 1]} : vector<2x96xf32> to vector<2x32xf32>
    %540 = arith.addf %538, %539 : vector<2x32xf32>
    %541 = arith.negf %540 : vector<2x32xf32>
    %542 = math.exp %541 : vector<2x32xf32>
    %cst_144 = arith.constant 1.000000e+00 : f32
    %543 = vector.broadcast %cst_144 : f32 to vector<2x32xf32>
    %544 = arith.addf %543, %542 : vector<2x32xf32>
    %545 = arith.divf %543, %544 : vector<2x32xf32>
    %546 = vector.extract_strided_slice %529 {offsets = [0, 64], sizes = [2, 32], strides = [1, 1]} : vector<2x96xf32> to vector<2x32xf32>
    %547 = vector.extract_strided_slice %526 {offsets = [0, 64], sizes = [2, 32], strides = [1, 1]} : vector<2x96xf32> to vector<2x32xf32>
    %548 = arith.mulf %537, %547 : vector<2x32xf32>
    %549 = arith.addf %546, %548 : vector<2x32xf32>
    %550 = math.tanh %549 : vector<2x32xf32>
    %cst_145 = arith.constant 1.000000e+00 : f32
    %551 = vector.broadcast %cst_145 : f32 to vector<2x32xf32>
    %552 = arith.subf %551, %545 : vector<2x32xf32>
    %553 = arith.mulf %552, %550 : vector<2x32xf32>
    %554 = arith.mulf %545, %523 : vector<2x32xf32>
    %555 = arith.addf %553, %554 : vector<2x32xf32>
    %c8_i32_146 = arith.constant 8 : i32
    %c0_147 = arith.constant 0 : index
    %c0_148 = arith.constant 0 : index
    %556 = vector.load %arg9[%c0_147, %c0_148] : memref<32x1xf32, #tpu.memory_space<vmem>>, vector<32x1xf32>
    %cst_149 = arith.constant dense<0.000000e+00> : vector<2x1xf32>
    %557 = tpu.matmul %555, %556, %cst_149 {dimension_numbers = #tpu.dot_dimension_numbers<[1], [0], [0], [1], [0, 0, 1, 1], [], []>} : vector<2x32xf32>, vector<32x1xf32>, vector<2x1xf32> -> vector<2x1xf32>
    %c0_150 = arith.constant 0 : index
    %c0_151 = arith.constant 0 : index
    %558 = vector.load %arg10[%c0_150, %c0_151] : memref<1x1xf32, #tpu.memory_space<vmem>>, vector<1x1xf32>
    %559 = vector.broadcast %558 : vector<1x1xf32> to vector<2x1xf32>
    %560 = arith.addf %557, %559 : vector<2x1xf32>
    %c0_152 = arith.constant 0 : index
    %c0_153 = arith.constant 0 : index
    %561 = vector.load %arg11[%c0_152, %c0_153] : memref<2x1xf32, #tpu.memory_space<vmem>>, vector<2x1xf32>
    tpu.vector_store %arg11[%c0_152, %c0_153], %560 {strides = array<i32>} : memref<2x1xf32, #tpu.memory_space<vmem>>, vector<2x1xf32>,
    return
  }
}

</mosaic_0001>

<llo_original>
// kernel: gru_classifier_forward.1
$region0: #{gru_classifier_forward.1}
  #allocation0 [shape = 'u32[]', space=smem, size = 0x4, offset = 0x4, fixed_abs, tag = 'smem constant byte address 0x4 - core index']
  #allocation1 [shape = 'u32[72,128]{1,0:T(1,128)}', space=vmem, size = 0x9000, scoped, tag = 'internal scratch']
  #allocation2 [shape = 'f32[16,96]{1,0:T(8,128)}', space=vmem, size = 0x2000, scoped, tag = 'scratch operand']
  #allocation3 [shape = 'f32[16,32]{1,0:T(8,128)}', space=vmem, size = 0x2000, scoped, tag = 'scratch operand']
  #allocation4 [shape = 'f32[1,1]{1,0:T(1,128)S(1)}', space=vmem, size = 0x200, scoped, tag = 'scoped memory for gru_classifier_forward.1']
  %s0 = inlined_call_operand.vmem [shape: f32[16,16], index: 0, kind: input, shape index: {}]
  %s1 = inlined_call_operand.hbm [shape: f32[16,96], index: 1, kind: input, shape index: {}]
  %s2 = inlined_call_operand.vmem [shape: f32[32,96], index: 2, kind: input, shape index: {}]
  %s3 = inlined_call_operand.vmem [shape: f32[1,96], index: 3, kind: input, shape index: {}]
  %s4 = inlined_call_operand.vmem [shape: f32[1,96], index: 4, kind: input, shape index: {}]
  %s5 = inlined_call_operand.vmem [shape: f32[32,96], index: 5, kind: input, shape index: {}]
  %s6 = inlined_call_operand.hbm [shape: f32[32,96], index: 6, kind: input, shape index: {}]
  %s7 = inlined_call_operand.vmem [shape: f32[1,96], index: 7, kind: input, shape index: {}]
  %s8 = inlined_call_operand.vmem [shape: f32[1,96], index: 8, kind: input, shape index: {}]
  %s9 = inlined_call_operand.vmem [shape: f32[32,1], index: 9, kind: input, shape index: {}]
  %s10 = inlined_call_operand.<no memory space> [shape: f32[1,1], index: 10, kind: input, shape index: {}]
  %s11 = inlined_call_operand.vmem [shape: f32[2,1], index: 11, kind: output, shape index: {}]
  %s12 = sld [smem:[#allocation0]]
  $region62: #{gru_classifier_forward.1} parent=0
    _
  %s14 = ssub.s32 1, %s12
  %s15 = scalar_select 0, %s14, %s12
  %v16 = vstv %s10
  %17 = vst [vmem:[#allocation4] sm:$0x1] %v16
  $region1: #{gru_classifier_forward.1} parent=0
    #allocation5 [shape = 'u8[8192]{0}', space=vmem, size = 0x2000, scoped, tag = 'input window, operand 1, single buffered']
    #allocation6 [shape = 's32[1]{0}', space=sflag, size = 0x4, scoped, tag = 'scoped memory for gru_classifier_forward.1']
    #allocation7 [shape = 'u8[16384]{0}', space=vmem, size = 0x4000, scoped, tag = 'input window, operand 6, single buffered']
    #allocation8 [shape = 's32[1]{0}', space=sflag, size = 0x4, scoped, tag = 'scoped memory for gru_classifier_forward.1']
    %18 = vsyncpa [#allocation6], 0
    %19 = vsyncpa [#allocation8], 0
    // Predicated region
    $region2: #{gru_classifier_forward.1} parent=1 // pred_check
      _
    $region3: #{gru_classifier_forward.1} parent=1 // pred_check_branch
      %21 = sbr.rel (0) target = $region5
    $region4: #{gru_classifier_forward.1} parent=1 // pred_region
      _
    $region5: #{gru_classifier_forward.1} parent=1 // pred_fallthru
      _
    // Predicated region
    $region6: #{gru_classifier_forward.1} parent=1 // pred_check
      _
    $region7: #{gru_classifier_forward.1} parent=1 // pred_check_branch
      %23 = sbr.rel (0) target = $region9
    $region8: #{gru_classifier_forward.1} parent=1 // pred_region
      %25 = vsyncadd [#allocation6], 0
      %s26 = sshll.u32 %s1, 4
      %s27 = int_to_ptr.hbm [resolvable:$true] %s26
      %s28 = sshll.u32 [#allocation5], 4
      %s29 = int_to_ptr.vmem [resolvable:$true] %s28
      %34 = dma.hbm_to_vmem [thread:$0]  %s27, 256, %s29, [#allocation6], 128, 128, 8
    $region9: #{gru_classifier_forward.1} parent=1 // pred_fallthru
      _
    // Predicated region
    $region10: #{gru_classifier_forward.1} parent=1 // pred_check
      _
    $region11: #{gru_classifier_forward.1} parent=1 // pred_check_branch
      %36 = sbr.rel (0) target = $region13
    $region12: #{gru_classifier_forward.1} parent=1 // pred_region
      _
    $region13: #{gru_classifier_forward.1} parent=1 // pred_fallthru
      _
    // Predicated region
    $region14: #{gru_classifier_forward.1} parent=1 // pred_check
      _
    $region15: #{gru_classifier_forward.1} parent=1 // pred_check_branch
      %38 = sbr.rel (0) target = $region17
    $region16: #{gru_classifier_forward.1} parent=1 // pred_region
      _
    $region17: #{gru_classifier_forward.1} parent=1 // pred_fallthru
      _
    // Predicated region
    $region18: #{gru_classifier_forward.1} parent=1 // pred_check
      _
    $region19: #{gru_classifier_forward.1} parent=1 // pred_check_branch
      %40 = sbr.rel (0) target = $region21
    $region20: #{gru_classifier_forward.1} parent=1 // pred_region
      _
    $region21: #{gru_classifier_forward.1} parent=1 // pred_fallthru
      _
    // Predicated region
    $region22: #{gru_classifier_forward.1} parent=1 // pred_check
      _
    $region23: #{gru_classifier_forward.1} parent=1 // pred_check_branch
      %42 = sbr.rel (0) target = $region25
    $region24: #{gru_classifier_forward.1} parent=1 // pred_region
      _
    $region25: #{gru_classifier_forward.1} parent=1 // pred_fallthru
      _
    // Predicated region
    $region26: #{gru_classifier_forward.1} parent=1 // pred_check
      _
    $region27: #{gru_classifier_forward.1} parent=1 // pred_check_branch
      %44 = sbr.rel (0) target = $region29
    $region28: #{gru_classifier_forward.1} parent=1 // pred_region
      %46 = vsyncadd [#allocation8], 0
      %s47 = sshll.u32 %s6, 4
      %s48 = int_to_ptr.hbm [resolvable:$true] %s47
      %s49 = sshll.u32 [#allocation7], 4
      %s50 = int_to_ptr.vmem [resolvable:$true] %s49
      %55 = dma.hbm_to_vmem [thread:$0]  %s48, 512, %s50, [#allocation8], 128, 128, 8
    $region29: #{gru_classifier_forward.1} parent=1 // pred_fallthru
      _
    // Predicated region
    $region30: #{gru_classifier_forward.1} parent=1 // pred_check
      _
    $region31: #{gru_classifier_forward.1} parent=1 // pred_check_branch
      %57 = sbr.rel (0) target = $region33
    $region32: #{gru_classifier_forward.1} parent=1 // pred_region
      _
    $region33: #{gru_classifier_forward.1} parent=1 // pred_fallthru
      _
    // Predicated region
    $region34: #{gru_classifier_forward.1} parent=1 // pred_check
      _
    $region35: #{gru_classifier_forward.1} parent=1 // pred_check_branch
      %59 = sbr.rel (0) target = $region37
    $region36: #{gru_classifier_forward.1} parent=1 // pred_region
      _
    $region37: #{gru_classifier_forward.1} parent=1 // pred_fallthru
      _
    // Predicated region
    $region38: #{gru_classifier_forward.1} parent=1 // pred_check
      _
    $region39: #{gru_classifier_forward.1} parent=1 // pred_check_branch
      %61 = sbr.rel (0) target = $region41
    $region40: #{gru_classifier_forward.1} parent=1 // pred_region
      _
    $region41: #{gru_classifier_forward.1} parent=1 // pred_fallthru
      _
    // Predicated region
    $region42: #{gru_classifier_forward.1} parent=1 // pred_check
      _
    $region43: #{gru_classifier_forward.1} parent=1 // pred_check_branch
      %63 = sbr.rel (0) target = $region45
    $region44: #{gru_classifier_forward.1} parent=1 // pred_region
      _
    $region45: #{gru_classifier_forward.1} parent=1 // pred_fallthru
      _
    // Predicated region
    $region46: #{gru_classifier_forward.1} parent=1 // pred_check
      _
    $region47: #{gru_classifier_forward.1} parent=1 // pred_check_branch
      %65 = sbr.rel (0) target = $region49
    $region48: #{gru_classifier_forward.1} parent=1 // pred_region
      %67 = dma.done [#allocation6], 256
    $region49: #{gru_classifier_forward.1} parent=1 // pred_fallthru
      _
    // Predicated region
    $region50: #{gru_classifier_forward.1} parent=1 // pred_check
      _
    $region51: #{gru_classifier_forward.1} parent=1 // pred_check_branch
      %69 = sbr.rel (0) target = $region53
    $region52: #{gru_classifier_forward.1} parent=1 // pred_region
      %71 = dma.done [#allocation8], 512
    $region53: #{gru_classifier_forward.1} parent=1 // pred_fallthru
      _
    %v72 = vld [vmem:[%s0] sm:$0xff]
    %v73 = vld [vmem:[%s0 + $0x8] sm:$0xff]
    %v74 = vld [vmem:[#allocation5] sm:$0xff]
    %v75 = vld [vmem:[#allocation5 + $0x8] sm:$0xff]
    %v76 = vld [vmem:[%s3] sm:$0x1]
    %v78 = vperm.slane %v76, 0
    %vm80 = vcmask 130048
    %v82 = vsel %vm80, %v72, 0
    %v85 = vsel %vm80, %v73, 0
    %87 = vmatpush.msra.mxu0 0.0
    %88 = vmatpush.msra.mxu0 0.0
    %89 = vmatpush.msra.mxu0 0.0
    %90 = vmatpush.msra.mxu0 0.0
    %91 = vmatpush.msra.mxu0 0.0
    %92 = vmatpush.msra.mxu0 0.0
    %93 = vmatpush.msra.mxu0 0.0
    %94 = vmatpush.msra.mxu0 0.0
    %95 = vmatpush.msra.mxu0 0.0
    %96 = vmatpush.msra.mxu0 0.0
    %97 = vmatpush.msra.mxu0 0.0
    %98 = vmatpush.msra.mxu0 0.0
    %99 = vmatpush.msra.mxu0 0.0
    %100 = vmatpush.msra.mxu0 0.0
    %101 = vmatpush.msra.mxu0 %v75
    %102 = vmatpush.msra.mxu0 %v74
    %103 = vmatmul.f32.gmra.mxu0 %v82
    %v104 = vpop.f32.mrf.mxu0
    %v105 = vadd.f32 %v78, %v104
    %106 = vmatmul.f32.gmra.mxu0 %v85
    %v107 = vpop.f32.mrf.mxu0
    %v108 = vadd.f32 %v78, %v107
    %109 = vdwg.mxu0
    %vm110 = vcmask 785408
    %111 = vst.msk [vmem:[#allocation2] sm:$0xff] %vm110, %v105
    %112 = vst.msk [vmem:[#allocation2 + $0x8] sm:$0xff] %vm110, %v108
    %v113 = vld [vmem:[%s2] sm:$0xff]
    %v114 = vld [vmem:[%s2 + $0x8] sm:$0xff]
    %v115 = vld [vmem:[%s2 + $0x10] sm:$0xff]
    %v116 = vld [vmem:[%s2 + $0x18] sm:$0xff]
    %v117 = vld [vmem:[%s4] sm:$0x1]
    %v119 = vperm.slane %v117, 0
    %vm121 = vcmask 261120
    %v123 = vsel %vm121, 0.0, 0
    %125 = vmatpush.msra.mxu0 0.0
    %126 = vmatpush.msra.mxu0 0.0
    %127 = vmatpush.msra.mxu0 0.0
    %128 = vmatpush.msra.mxu0 0.0
    %129 = vmatpush.msra.mxu0 0.0
    %130 = vmatpush.msra.mxu0 0.0
    %131 = vmatpush.msra.mxu0 0.0
    %132 = vmatpush.msra.mxu0 0.0
    %133 = vmatpush.msra.mxu0 0.0
    %134 = vmatpush.msra.mxu0 0.0
    %135 = vmatpush.msra.mxu0 0.0
    %136 = vmatpush.msra.mxu0 0.0
    %137 = vmatpush.msra.mxu0 %v116
    %138 = vmatpush.msra.mxu0 %v115
    %139 = vmatpush.msra.mxu0 %v114
    %140 = vmatpush.msra.mxu0 %v113
    %141 = vmatmul.f32.gmra.mxu0 %v123
    %v142 = vpop.f32.mrf.mxu0
    %v143 = vadd.f32 %v119, %v142
    %144 = vdwg.mxu0
    %v145 = vld [vmem:[#allocation2] sm:$0x3]
    %v146 = vadd.f32 %v145, %v143
    %v147 = vxor.u32 %v146, 2147483648
    %v148 = vmul.f32 %v147, 1.442695
    %v149 = vpow.pop %v148
    %v150 = vadd.f32 %v149, 1.0
    %v151 = vrcp.pop %v150
    %v152 = vmul.f32 %v150, %v151
    %v153 = vsub.f32 1.0, %v152
    %v154 = vmul.f32 %v151, %v153
    %v155 = vadd.f32 %v151, %v154
    %vm156 = vweird.f32 %v150
    %vm157 = vweird.f32 %v151
    %vm158 = vmor %vm156, %vm157
    %v159 = vsel %vm158, %v151, %v155
    %v160 = vand.u32 2147483647, %v150
    %vm161 = vcmp.eq.f32.partialorder %v160, 8.507059e+37
    %v162 = vand.u32 %v150, 2147483648
    %v163 = vor.u32 1.1754944e-38, %v162
    %v164 = vsel %vm161, %v163, %v159
    %v165 = vmul.f32 1.0, %v164
    %167 = vrot.lane.b32.xlu0 %v143, 64
    %v168 = vpop.permute.xlu0 %167
    %v170 = vmul.f32 %v165, %v168
    %172 = vrot.lane.b32.xlu0 %v170, 64
    %v173 = vpop.permute.xlu0 %172
    %v175 = vadd.f32 %v145, %v173
    %v176 = vtanh.pop %v175
    %v177 = vsub.f32 1.0, %v165
    %179 = vrot.lane.b32.xlu0 %v176, 96
    %v180 = vpop.permute.xlu0 %179
    %v182 = vmul.f32 %v177, %v180
    %v183 = vmul.f32 %v165, 0.0
    %v184 = vadd.f32 %v182, %v183
    %186 = vrot.lane.b32.xlu0 %v184, 96
    %v187 = vpop.permute.xlu0 %186
    %vm189 = vcmask 254976
    %190 = vst.msk [vmem:[#allocation3] sm:$0x3] %vm189, %v187
    %v191 = vsel %vm121, %v187, 0
    %193 = vmatpush.msra.mxu0 0.0
    %194 = vmatpush.msra.mxu0 0.0
    %195 = vmatpush.msra.mxu0 0.0
    %196 = vmatpush.msra.mxu0 0.0
    %197 = vmatpush.msra.mxu0 0.0
    %198 = vmatpush.msra.mxu0 0.0
    %199 = vmatpush.msra.mxu0 0.0
    %200 = vmatpush.msra.mxu0 0.0
    %201 = vmatpush.msra.mxu0 0.0
    %202 = vmatpush.msra.mxu0 0.0
    %203 = vmatpush.msra.mxu0 0.0
    %204 = vmatpush.msra.mxu0 0.0
    %205 = vmatpush.msra.mxu0 %v116
    %206 = vmatpush.msra.mxu0 %v115
    %207 = vmatpush.msra.mxu0 %v114
    %208 = vmatpush.msra.mxu0 %v113
    %209 = vmatmul.f32.gmra.mxu0 %v191
    %v210 = vpop.f32.mrf.mxu0
    %v211 = vadd.f32 %v119, %v210
    %212 = vdwg.mxu0
    %v213 = vld [vmem:[#allocation2 + $0x2] sm:$0x3]
    %v214 = vadd.f32 %v213, %v211
    %v215 = vxor.u32 %v214, 2147483648
    %v216 = vmul.f32 %v215, 1.442695
    %v217 = vpow.pop %v216
    %v218 = vadd.f32 %v217, 1.0
    %v219 = vrcp.pop %v218
    %v220 = vmul.f32 %v218, %v219
    %v221 = vsub.f32 1.0, %v220
    %v222 = vmul.f32 %v219, %v221
    %v223 = vadd.f32 %v219, %v222
    %vm224 = vweird.f32 %v218
    %vm225 = vweird.f32 %v219
    %vm226 = vmor %vm224, %vm225
    %v227 = vsel %vm226, %v219, %v223
    %v228 = vand.u32 2147483647, %v218
    %vm229 = vcmp.eq.f32.partialorder %v228, 8.507059e+37
    %v230 = vand.u32 %v218, 2147483648
    %v231 = vor.u32 1.1754944e-38, %v230
    %v232 = vsel %vm229, %v231, %v227
    %v233 = vmul.f32 1.0, %v232
    %235 = vrot.lane.b32.xlu0 %v211, 64
    %v236 = vpop.permute.xlu0 %235
    %v238 = vmul.f32 %v233, %v236
    %240 = vrot.lane.b32.xlu0 %v238, 64
    %v241 = vpop.permute.xlu0 %240
    %v243 = vadd.f32 %v213, %v241
    %v244 = vtanh.pop %v243
    %v245 = vsub.f32 1.0, %v233
    %247 = vrot.lane.b32.xlu0 %v244, 96
    %v248 = vpop.permute.xlu0 %247
    %v250 = vmul.f32 %v245, %v248
    %v251 = vmul.f32 %v233, %v184
    %v252 = vadd.f32 %v250, %v251
    %254 = vrot.lane.b32.xlu0 %v252, 96
    %v255 = vpop.permute.xlu0 %254
    %257 = vst.msk [vmem:[#allocation3 + $0x2] sm:$0x3] %vm189, %v255
    %v258 = vsel %vm121, %v255, 0
    %260 = vmatpush.msra.mxu0 0.0
    %261 = vmatpush.msra.mxu0 0.0
    %262 = vmatpush.msra.mxu0 0.0
    %263 = vmatpush.msra.mxu0 0.0
    %264 = vmatpush.msra.mxu0 0.0
    %265 = vmatpush.msra.mxu0 0.0
    %266 = vmatpush.msra.mxu0 0.0
    %267 = vmatpush.msra.mxu0 0.0
    %268 = vmatpush.msra.mxu0 0.0
    %269 = vmatpush.msra.mxu0 0.0
    %270 = vmatpush.msra.mxu0 0.0
    %271 = vmatpush.msra.mxu0 0.0
    %272 = vmatpush.msra.mxu0 %v116
    %273 = vmatpush.msra.mxu0 %v115
    %274 = vmatpush.msra.mxu0 %v114
    %275 = vmatpush.msra.mxu0 %v113
    %276 = vmatmul.f32.gmra.mxu0 %v258
    %v277 = vpop.f32.mrf.mxu0
    %v278 = vadd.f32 %v119, %v277
    %279 = vdwg.mxu0
    %v280 = vld [vmem:[#allocation2 + $0x4] sm:$0x3]
    %v281 = vadd.f32 %v280, %v278
    %v282 = vxor.u32 %v281, 2147483648
    %v283 = vmul.f32 %v282, 1.442695
    %v284 = vpow.pop %v283
    %v285 = vadd.f32 %v284, 1.0
    %v286 = vrcp.pop %v285
    %v287 = vmul.f32 %v285, %v286
    %v288 = vsub.f32 1.0, %v287
    %v289 = vmul.f32 %v286, %v288
    %v290 = vadd.f32 %v286, %v289
    %vm291 = vweird.f32 %v285
    %vm292 = vweird.f32 %v286
    %vm293 = vmor %vm291, %vm292
    %v294 = vsel %vm293, %v286, %v290
    %v295 = vand.u32 2147483647, %v285
    %vm296 = vcmp.eq.f32.partialorder %v295, 8.507059e+37
    %v297 = vand.u32 %v285, 2147483648
    %v298 = vor.u32 1.1754944e-38, %v297
    %v299 = vsel %vm296, %v298, %v294
    %v300 = vmul.f32 1.0, %v299
    %302 = vrot.lane.b32.xlu0 %v278, 64
    %v303 = vpop.permute.xlu0 %302
    %v305 = vmul.f32 %v300, %v303
    %307 = vrot.lane.b32.xlu0 %v305, 64
    %v308 = vpop.permute.xlu0 %307
    %v310 = vadd.f32 %v280, %v308
    %v311 = vtanh.pop %v310
    %v312 = vsub.f32 1.0, %v300
    %314 = vrot.lane.b32.xlu0 %v311, 96
    %v315 = vpop.permute.xlu0 %314
    %v317 = vmul.f32 %v312, %v315
    %v318 = vmul.f32 %v300, %v252
    %v319 = vadd.f32 %v317, %v318
    %321 = vrot.lane.b32.xlu0 %v319, 96
    %v322 = vpop.permute.xlu0 %321
    %324 = vst.msk [vmem:[#allocation3 + $0x4] sm:$0x3] %vm189, %v322
    %v325 = vsel %vm121, %v322, 0
    %327 = vmatpush.msra.mxu0 0.0
    %328 = vmatpush.msra.mxu0 0.0
    %329 = vmatpush.msra.mxu0 0.0
    %330 = vmatpush.msra.mxu0 0.0
    %331 = vmatpush.msra.mxu0 0.0
    %332 = vmatpush.msra.mxu0 0.0
    %333 = vmatpush.msra.mxu0 0.0
    %334 = vmatpush.msra.mxu0 0.0
    %335 = vmatpush.msra.mxu0 0.0
    %336 = vmatpush.msra.mxu0 0.0
    %337 = vmatpush.msra.mxu0 0.0
    %338 = vmatpush.msra.mxu0 0.0
    %339 = vmatpush.msra.mxu0 %v116
    %340 = vmatpush.msra.mxu0 %v115
    %341 = vmatpush.msra.mxu0 %v114
    %342 = vmatpush.msra.mxu0 %v113
    %343 = vmatmul.f32.gmra.mxu0 %v325
    %v344 = vpop.f32.mrf.mxu0
    %v345 = vadd.f32 %v119, %v344
    %346 = vdwg.mxu0
    %v347 = vld [vmem:[#allocation2 + $0x6] sm:$0x3]
    %v348 = vadd.f32 %v347, %v345
    %v349 = vxor.u32 %v348, 2147483648
    %v350 = vmul.f32 %v349, 1.442695
    %v351 = vpow.pop %v350
    %v352 = vadd.f32 %v351, 1.0
    %v353 = vrcp.pop %v352
    %v354 = vmul.f32 %v352, %v353
    %v355 = vsub.f32 1.0, %v354
    %v356 = vmul.f32 %v353, %v355
    %v357 = vadd.f32 %v353, %v356
    %vm358 = vweird.f32 %v352
    %vm359 = vweird.f32 %v353
    %vm360 = vmor %vm358, %vm359
    %v361 = vsel %vm360, %v353, %v357
    %v362 = vand.u32 2147483647, %v352
    %vm363 = vcmp.eq.f32.partialorder %v362, 8.507059e+37
    %v364 = vand.u32 %v352, 2147483648
    %v365 = vor.u32 1.1754944e-38, %v364
    %v366 = vsel %vm363, %v365, %v361
    %v367 = vmul.f32 1.0, %v366
    %369 = vrot.lane.b32.xlu0 %v345, 64
    %v370 = vpop.permute.xlu0 %369
    %v372 = vmul.f32 %v367, %v370
    %374 = vrot.lane.b32.xlu0 %v372, 64
    %v375 = vpop.permute.xlu0 %374
    %v377 = vadd.f32 %v347, %v375
    %v378 = vtanh.pop %v377
    %v379 = vsub.f32 1.0, %v367
    %381 = vrot.lane.b32.xlu0 %v378, 96
    %v382 = vpop.permute.xlu0 %381
    %v384 = vmul.f32 %v379, %v382
    %v385 = vmul.f32 %v367, %v319
    %v386 = vadd.f32 %v384, %v385
    %388 = vrot.lane.b32.xlu0 %v386, 96
    %v389 = vpop.permute.xlu0 %388
    %391 = vst.msk [vmem:[#allocation3 + $0x6] sm:$0x3] %vm189, %v389
    %v392 = vsel %vm121, %v389, 0
    %394 = vmatpush.msra.mxu0 0.0
    %395 = vmatpush.msra.mxu0 0.0
    %396 = vmatpush.msra.mxu0 0.0
    %397 = vmatpush.msra.mxu0 0.0
    %398 = vmatpush.msra.mxu0 0.0
    %399 = vmatpush.msra.mxu0 0.0
    %400 = vmatpush.msra.mxu0 0.0
    %401 = vmatpush.msra.mxu0 0.0
    %402 = vmatpush.msra.mxu0 0.0
    %403 = vmatpush.msra.mxu0 0.0
    %404 = vmatpush.msra.mxu0 0.0
    %405 = vmatpush.msra.mxu0 0.0
    %406 = vmatpush.msra.mxu0 %v116
    %407 = vmatpush.msra.mxu0 %v115
    %408 = vmatpush.msra.mxu0 %v114
    %409 = vmatpush.msra.mxu0 %v113
    %410 = vmatmul.f32.gmra.mxu0 %v392
    %v411 = vpop.f32.mrf.mxu0
    %v412 = vadd.f32 %v119, %v411
    %413 = vdwg.mxu0
    %v414 = vld [vmem:[#allocation2 + $0x8] sm:$0x3]
    %v415 = vadd.f32 %v414, %v412
    %v416 = vxor.u32 %v415, 2147483648
    %v417 = vmul.f32 %v416, 1.442695
    %v418 = vpow.pop %v417
    %v419 = vadd.f32 %v418, 1.0
    %v420 = vrcp.pop %v419
    %v421 = vmul.f32 %v419, %v420
    %v422 = vsub.f32 1.0, %v421
    %v423 = vmul.f32 %v420, %v422
    %v424 = vadd.f32 %v420, %v423
    %vm425 = vweird.f32 %v419
    %vm426 = vweird.f32 %v420
    %vm427 = vmor %vm425, %vm426
    %v428 = vsel %vm427, %v420, %v424
    %v429 = vand.u32 2147483647, %v419
    %vm430 = vcmp.eq.f32.partialorder %v429, 8.507059e+37
    %v431 = vand.u32 %v419, 2147483648
    %v432 = vor.u32 1.1754944e-38, %v431
    %v433 = vsel %vm430, %v432, %v428
    %v434 = vmul.f32 1.0, %v433
    %436 = vrot.lane.b32.xlu0 %v412, 64
    %v437 = vpop.permute.xlu0 %436
    %v439 = vmul.f32 %v434, %v437
    %441 = vrot.lane.b32.xlu0 %v439, 64
    %v442 = vpop.permute.xlu0 %441
    %v444 = vadd.f32 %v414, %v442
    %v445 = vtanh.pop %v444
    %v446 = vsub.f32 1.0, %v434
    %448 = vrot.lane.b32.xlu0 %v445, 96
    %v449 = vpop.permute.xlu0 %448
    %v451 = vmul.f32 %v446, %v449
    %v452 = vmul.f32 %v434, %v386
    %v453 = vadd.f32 %v451, %v452
    %455 = vrot.lane.b32.xlu0 %v453, 96
    %v456 = vpop.permute.xlu0 %455
    %458 = vst.msk [vmem:[#allocation3 + $0x8] sm:$0x3] %vm189, %v456
    %v459 = vsel %vm121, %v456, 0
    %461 = vmatpush.msra.mxu0 0.0
    %462 = vmatpush.msra.mxu0 0.0
    %463 = vmatpush.msra.mxu0 0.0
    %464 = vmatpush.msra.mxu0 0.0
    %465 = vmatpush.msra.mxu0 0.0
    %466 = vmatpush.msra.mxu0 0.0
    %467 = vmatpush.msra.mxu0 0.0
    %468 = vmatpush.msra.mxu0 0.0
    %469 = vmatpush.msra.mxu0 0.0
    %470 = vmatpush.msra.mxu0 0.0
    %471 = vmatpush.msra.mxu0 0.0
    %472 = vmatpush.msra.mxu0 0.0
    %473 = vmatpush.msra.mxu0 %v116
    %474 = vmatpush.msra.mxu0 %v115
    %475 = vmatpush.msra.mxu0 %v114
    %476 = vmatpush.msra.mxu0 %v113
    %477 = vmatmul.f32.gmra.mxu0 %v459
    %v478 = vpop.f32.mrf.mxu0
    %v479 = vadd.f32 %v119, %v478
    %480 = vdwg.mxu0
    %v481 = vld [vmem:[#allocation2 + $0xa] sm:$0x3]
    %v482 = vadd.f32 %v481, %v479
    %v483 = vxor.u32 %v482, 2147483648
    %v484 = vmul.f32 %v483, 1.442695
    %v485 = vpow.pop %v484
    %v486 = vadd.f32 %v485, 1.0
    %v487 = vrcp.pop %v486
    %v488 = vmul.f32 %v486, %v487
    %v489 = vsub.f32 1.0, %v488
    %v490 = vmul.f32 %v487, %v489
    %v491 = vadd.f32 %v487, %v490
    %vm492 = vweird.f32 %v486
    %vm493 = vweird.f32 %v487
    %vm494 = vmor %vm492, %vm493
    %v495 = vsel %vm494, %v487, %v491
    %v496 = vand.u32 2147483647, %v486
    %vm497 = vcmp.eq.f32.partialorder %v496, 8.507059e+37
    %v498 = vand.u32 %v486, 2147483648
    %v499 = vor.u32 1.1754944e-38, %v498
    %v500 = vsel %vm497, %v499, %v495
    %v501 = vmul.f32 1.0, %v500
    %503 = vrot.lane.b32.xlu0 %v479, 64
    %v504 = vpop.permute.xlu0 %503
    %v506 = vmul.f32 %v501, %v504
    %508 = vrot.lane.b32.xlu0 %v506, 64
    %v509 = vpop.permute.xlu0 %508
    %v511 = vadd.f32 %v481, %v509
    %v512 = vtanh.pop %v511
    %v513 = vsub.f32 1.0, %v501
    %515 = vrot.lane.b32.xlu0 %v512, 96
    %v516 = vpop.permute.xlu0 %515
    %v518 = vmul.f32 %v513, %v516
    %v519 = vmul.f32 %v501, %v453
    %v520 = vadd.f32 %v518, %v519
    %522 = vrot.lane.b32.xlu0 %v520, 96
    %v523 = vpop.permute.xlu0 %522
    %525 = vst.msk [vmem:[#allocation3 + $0xa] sm:$0x3] %vm189, %v523
    %v526 = vsel %vm121, %v523, 0
    %528 = vmatpush.msra.mxu0 0.0
    %529 = vmatpush.msra.mxu0 0.0
    %530 = vmatpush.msra.mxu0 0.0
    %531 = vmatpush.msra.mxu0 0.0
    %532 = vmatpush.msra.mxu0 0.0
    %533 = vmatpush.msra.mxu0 0.0
    %534 = vmatpush.msra.mxu0 0.0
    %535 = vmatpush.msra.mxu0 0.0
    %536 = vmatpush.msra.mxu0 0.0
    %537 = vmatpush.msra.mxu0 0.0
    %538 = vmatpush.msra.mxu0 0.0
    %539 = vmatpush.msra.mxu0 0.0
    %540 = vmatpush.msra.mxu0 %v116
    %541 = vmatpush.msra.mxu0 %v115
    %542 = vmatpush.msra.mxu0 %v114
    %543 = vmatpush.msra.mxu0 %v113
    %544 = vmatmul.f32.gmra.mxu0 %v526
    %v545 = vpop.f32.mrf.mxu0
    %v546 = vadd.f32 %v119, %v545
    %547 = vdwg.mxu0
    %v548 = vld [vmem:[#allocation2 + $0xc] sm:$0x3]
    %v549 = vadd.f32 %v548, %v546
    %v550 = vxor.u32 %v549, 2147483648
    %v551 = vmul.f32 %v550, 1.442695
    %v552 = vpow.pop %v551
    %v553 = vadd.f32 %v552, 1.0
    %v554 = vrcp.pop %v553
    %v555 = vmul.f32 %v553, %v554
    %v556 = vsub.f32 1.0, %v555
    %v557 = vmul.f32 %v554, %v556
    %v558 = vadd.f32 %v554, %v557
    %vm559 = vweird.f32 %v553
    %vm560 = vweird.f32 %v554
    %vm561 = vmor %vm559, %vm560
    %v562 = vsel %vm561, %v554, %v558
    %v563 = vand.u32 2147483647, %v553
    %vm564 = vcmp.eq.f32.partialorder %v563, 8.507059e+37
    %v565 = vand.u32 %v553, 2147483648
    %v566 = vor.u32 1.1754944e-38, %v565
    %v567 = vsel %vm564, %v566, %v562
    %v568 = vmul.f32 1.0, %v567
    %570 = vrot.lane.b32.xlu0 %v546, 64
    %v571 = vpop.permute.xlu0 %570
    %v573 = vmul.f32 %v568, %v571
    %575 = vrot.lane.b32.xlu0 %v573, 64
    %v576 = vpop.permute.xlu0 %575
    %v578 = vadd.f32 %v548, %v576
    %v579 = vtanh.pop %v578
    %v580 = vsub.f32 1.0, %v568
    %582 = vrot.lane.b32.xlu0 %v579, 96
    %v583 = vpop.permute.xlu0 %582
    %v585 = vmul.f32 %v580, %v583
    %v586 = vmul.f32 %v568, %v520
    %v587 = vadd.f32 %v585, %v586
    %589 = vrot.lane.b32.xlu0 %v587, 96
    %v590 = vpop.permute.xlu0 %589
    %592 = vst.msk [vmem:[#allocation3 + $0xc] sm:$0x3] %vm189, %v590
    %v593 = vsel %vm121, %v590, 0
    %595 = vmatpush.msra.mxu0 0.0
    %596 = vmatpush.msra.mxu0 0.0
    %597 = vmatpush.msra.mxu0 0.0
    %598 = vmatpush.msra.mxu0 0.0
    %599 = vmatpush.msra.mxu0 0.0
    %600 = vmatpush.msra.mxu0 0.0
    %601 = vmatpush.msra.mxu0 0.0
    %602 = vmatpush.msra.mxu0 0.0
    %603 = vmatpush.msra.mxu0 0.0
    %604 = vmatpush.msra.mxu0 0.0
    %605 = vmatpush.msra.mxu0 0.0
    %606 = vmatpush.msra.mxu0 0.0
    %607 = vmatpush.msra.mxu0 %v116
    %608 = vmatpush.msra.mxu0 %v115
    %609 = vmatpush.msra.mxu0 %v114
    %610 = vmatpush.msra.mxu0 %v113
    %611 = vmatmul.f32.gmra.mxu0 %v593
    %v612 = vpop.f32.mrf.mxu0
    %v613 = vadd.f32 %v119, %v612
    %614 = vdwg.mxu0
    %v615 = vld [vmem:[#allocation2 + $0xe] sm:$0x3]
    %v616 = vadd.f32 %v615, %v613
    %v617 = vxor.u32 %v616, 2147483648
    %v618 = vmul.f32 %v617, 1.442695
    %v619 = vpow.pop %v618
    %v620 = vadd.f32 %v619, 1.0
    %v621 = vrcp.pop %v620
    %v622 = vmul.f32 %v620, %v621
    %v623 = vsub.f32 1.0, %v622
    %v624 = vmul.f32 %v621, %v623
    %v625 = vadd.f32 %v621, %v624
    %vm626 = vweird.f32 %v620
    %vm627 = vweird.f32 %v621
    %vm628 = vmor %vm626, %vm627
    %v629 = vsel %vm628, %v621, %v625
    %v630 = vand.u32 2147483647, %v620
    %vm631 = vcmp.eq.f32.partialorder %v630, 8.507059e+37
    %v632 = vand.u32 %v620, 2147483648
    %v633 = vor.u32 1.1754944e-38, %v632
    %v634 = vsel %vm631, %v633, %v629
    %v635 = vmul.f32 1.0, %v634
    %637 = vrot.lane.b32.xlu0 %v613, 64
    %v638 = vpop.permute.xlu0 %637
    %v640 = vmul.f32 %v635, %v638
    %642 = vrot.lane.b32.xlu0 %v640, 64
    %v643 = vpop.permute.xlu0 %642
    %v645 = vadd.f32 %v615, %v643
    %v646 = vtanh.pop %v645
    %v647 = vsub.f32 1.0, %v635
    %649 = vrot.lane.b32.xlu0 %v646, 96
    %v650 = vpop.permute.xlu0 %649
    %v652 = vmul.f32 %v647, %v650
    %v653 = vmul.f32 %v635, %v587
    %v654 = vadd.f32 %v652, %v653
    %656 = vrot.lane.b32.xlu0 %v654, 96
    %v657 = vpop.permute.xlu0 %656
    %659 = vst.msk [vmem:[#allocation3 + $0xe] sm:$0x3] %vm189, %v657
    %v660 = vld [vmem:[#allocation3] sm:$0xff]
    %v661 = vld [vmem:[#allocation3 + $0x8] sm:$0xff]
    %v662 = vld [vmem:[%s5] sm:$0xff]
    %v663 = vld [vmem:[%s5 + $0x8] sm:$0xff]
    %v664 = vld [vmem:[%s5 + $0x10] sm:$0xff]
    %v665 = vld [vmem:[%s5 + $0x18] sm:$0xff]
    %v666 = vld [vmem:[%s7] sm:$0x1]
    %v668 = vperm.slane %v666, 0
    %v671 = vsel %vm121, %v660, 0
    %v674 = vsel %vm121, %v661, 0
    %676 = vmatpush.msra.mxu0 0.0
    %677 = vmatpush.msra.mxu0 0.0
    %678 = vmatpush.msra.mxu0 0.0
    %679 = vmatpush.msra.mxu0 0.0
    %680 = vmatpush.msra.mxu0 0.0
    %681 = vmatpush.msra.mxu0 0.0
    %682 = vmatpush.msra.mxu0 0.0
    %683 = vmatpush.msra.mxu0 0.0
    %684 = vmatpush.msra.mxu0 0.0
    %685 = vmatpush.msra.mxu0 0.0
    %686 = vmatpush.msra.mxu0 0.0
    %687 = vmatpush.msra.mxu0 0.0
    %688 = vmatpush.msra.mxu0 %v665
    %689 = vmatpush.msra.mxu0 %v664
    %690 = vmatpush.msra.mxu0 %v663
    %691 = vmatpush.msra.mxu0 %v662
    %692 = vmatmul.f32.gmra.mxu0 %v671
    %v693 = vpop.f32.mrf.mxu0
    %v694 = vadd.f32 %v668, %v693
    %695 = vmatmul.f32.gmra.mxu0 %v674
    %v696 = vpop.f32.mrf.mxu0
    %v697 = vadd.f32 %v668, %v696
    %698 = vdwg.mxu0
    %699 = vst.msk [vmem:[#allocation2] sm:$0xff] %vm110, %v694
    %700 = vst.msk [vmem:[#allocation2 + $0x8] sm:$0xff] %vm110, %v697
    %v701 = vld [vmem:[#allocation7] sm:$0xff]
    %v702 = vld [vmem:[#allocation7 + $0x8] sm:$0xff]
    %v703 = vld [vmem:[#allocation7 + $0x10] sm:$0xff]
    %v704 = vld [vmem:[#allocation7 + $0x18] sm:$0xff]
    %v705 = vld [vmem:[%s8] sm:$0x1]
    %v707 = vperm.slane %v705, 0
    %709 = vmatpush.msra.mxu0 0.0
    %710 = vmatpush.msra.mxu0 0.0
    %711 = vmatpush.msra.mxu0 0.0
    %712 = vmatpush.msra.mxu0 0.0
    %713 = vmatpush.msra.mxu0 0.0
    %714 = vmatpush.msra.mxu0 0.0
    %715 = vmatpush.msra.mxu0 0.0
    %716 = vmatpush.msra.mxu0 0.0
    %717 = vmatpush.msra.mxu0 0.0
    %718 = vmatpush.msra.mxu0 0.0
    %719 = vmatpush.msra.mxu0 0.0
    %720 = vmatpush.msra.mxu0 0.0
    %721 = vmatpush.msra.mxu0 %v704
    %722 = vmatpush.msra.mxu0 %v703
    %723 = vmatpush.msra.mxu0 %v702
    %724 = vmatpush.msra.mxu0 %v701
    %725 = vmatmul.f32.gmra.mxu0 %v123
    %v726 = vpop.f32.mrf.mxu0
    %v727 = vadd.f32 %v707, %v726
    %728 = vdwg.mxu0
    %v729 = vld [vmem:[#allocation2] sm:$0x3]
    %v730 = vadd.f32 %v729, %v727
    %v731 = vxor.u32 %v730, 2147483648
    %v732 = vmul.f32 %v731, 1.442695
    %v733 = vpow.pop %v732
    %v734 = vadd.f32 %v733, 1.0
    %v735 = vrcp.pop %v734
    %v736 = vmul.f32 %v734, %v735
    %v737 = vsub.f32 1.0, %v736
    %v738 = vmul.f32 %v735, %v737
    %v739 = vadd.f32 %v735, %v738
    %vm740 = vweird.f32 %v734
    %vm741 = vweird.f32 %v735
    %vm742 = vmor %vm740, %vm741
    %v743 = vsel %vm742, %v735, %v739
    %v744 = vand.u32 2147483647, %v734
    %vm745 = vcmp.eq.f32.partialorder %v744, 8.507059e+37
    %v746 = vand.u32 %v734, 2147483648
    %v747 = vor.u32 1.1754944e-38, %v746
    %v748 = vsel %vm745, %v747, %v743
    %v749 = vmul.f32 1.0, %v748
    %751 = vrot.lane.b32.xlu0 %v727, 64
    %v752 = vpop.permute.xlu0 %751
    %v754 = vmul.f32 %v749, %v752
    %756 = vrot.lane.b32.xlu0 %v754, 64
    %v757 = vpop.permute.xlu0 %756
    %v759 = vadd.f32 %v729, %v757
    %v760 = vtanh.pop %v759
    %v761 = vsub.f32 1.0, %v749
    %763 = vrot.lane.b32.xlu0 %v760, 96
    %v764 = vpop.permute.xlu0 %763
    %v766 = vmul.f32 %v761, %v764
    %v767 = vmul.f32 %v749, 0.0
    %v768 = vadd.f32 %v766, %v767
    %770 = vrot.lane.b32.xlu0 %v768, 96
    %v771 = vpop.permute.xlu0 %770
    %v772 = vsel %vm121, %v771, 0
    %774 = vmatpush.msra.mxu0 0.0
    %775 = vmatpush.msra.mxu0 0.0
    %776 = vmatpush.msra.mxu0 0.0
    %777 = vmatpush.msra.mxu0 0.0
    %778 = vmatpush.msra.mxu0 0.0
    %779 = vmatpush.msra.mxu0 0.0
    %780 = vmatpush.msra.mxu0 0.0
    %781 = vmatpush.msra.mxu0 0.0
    %782 = vmatpush.msra.mxu0 0.0
    %783 = vmatpush.msra.mxu0 0.0
    %784 = vmatpush.msra.mxu0 0.0
    %785 = vmatpush.msra.mxu0 0.0
    %786 = vmatpush.msra.mxu0 %v704
    %787 = vmatpush.msra.mxu0 %v703
    %788 = vmatpush.msra.mxu0 %v702
    %789 = vmatpush.msra.mxu0 %v701
    %790 = vmatmul.f32.gmra.mxu0 %v772
    %v791 = vpop.f32.mrf.mxu0
    %v792 = vadd.f32 %v707, %v791
    %793 = vdwg.mxu0
    %v794 = vld [vmem:[#allocation2 + $0x2] sm:$0x3]
    %v795 = vadd.f32 %v794, %v792
    %v796 = vxor.u32 %v795, 2147483648
    %v797 = vmul.f32 %v796, 1.442695
    %v798 = vpow.pop %v797
    %v799 = vadd.f32 %v798, 1.0
    %v800 = vrcp.pop %v799
    %v801 = vmul.f32 %v799, %v800
    %v802 = vsub.f32 1.0, %v801
    %v803 = vmul.f32 %v800, %v802
    %v804 = vadd.f32 %v800, %v803
    %vm805 = vweird.f32 %v799
    %vm806 = vweird.f32 %v800
    %vm807 = vmor %vm805, %vm806
    %v808 = vsel %vm807, %v800, %v804
    %v809 = vand.u32 2147483647, %v799
    %vm810 = vcmp.eq.f32.partialorder %v809, 8.507059e+37
    %v811 = vand.u32 %v799, 2147483648
    %v812 = vor.u32 1.1754944e-38, %v811
    %v813 = vsel %vm810, %v812, %v808
    %v814 = vmul.f32 1.0, %v813
    %816 = vrot.lane.b32.xlu0 %v792, 64
    %v817 = vpop.permute.xlu0 %816
    %v819 = vmul.f32 %v814, %v817
    %821 = vrot.lane.b32.xlu0 %v819, 64
    %v822 = vpop.permute.xlu0 %821
    %v824 = vadd.f32 %v794, %v822
    %v825 = vtanh.pop %v824
    %v826 = vsub.f32 1.0, %v814
    %828 = vrot.lane.b32.xlu0 %v825, 96
    %v829 = vpop.permute.xlu0 %828
    %v831 = vmul.f32 %v826, %v829
    %v832 = vmul.f32 %v814, %v768
    %v833 = vadd.f32 %v831, %v832
    %835 = vrot.lane.b32.xlu0 %v833, 96
    %v836 = vpop.permute.xlu0 %835
    %v837 = vsel %vm121, %v836, 0
    %839 = vmatpush.msra.mxu0 0.0
    %840 = vmatpush.msra.mxu0 0.0
    %841 = vmatpush.msra.mxu0 0.0
    %842 = vmatpush.msra.mxu0 0.0
    %843 = vmatpush.msra.mxu0 0.0
    %844 = vmatpush.msra.mxu0 0.0
    %845 = vmatpush.msra.mxu0 0.0
    %846 = vmatpush.msra.mxu0 0.0
    %847 = vmatpush.msra.mxu0 0.0
    %848 = vmatpush.msra.mxu0 0.0
    %849 = vmatpush.msra.mxu0 0.0
    %850 = vmatpush.msra.mxu0 0.0
    %851 = vmatpush.msra.mxu0 %v704
    %852 = vmatpush.msra.mxu0 %v703
    %853 = vmatpush.msra.mxu0 %v702
    %854 = vmatpush.msra.mxu0 %v701
    %855 = vmatmul.f32.gmra.mxu0 %v837
    %v856 = vpop.f32.mrf.mxu0
    %v857 = vadd.f32 %v707, %v856
    %858 = vdwg.mxu0
    %v859 = vld [vmem:[#allocation2 + $0x4] sm:$0x3]
    %v860 = vadd.f32 %v859, %v857
    %v861 = vxor.u32 %v860, 2147483648
    %v862 = vmul.f32 %v861, 1.442695
    %v863 = vpow.pop %v862
    %v864 = vadd.f32 %v863, 1.0
    %v865 = vrcp.pop %v864
    %v866 = vmul.f32 %v864, %v865
    %v867 = vsub.f32 1.0, %v866
    %v868 = vmul.f32 %v865, %v867
    %v869 = vadd.f32 %v865, %v868
    %vm870 = vweird.f32 %v864
    %vm871 = vweird.f32 %v865
    %vm872 = vmor %vm870, %vm871
    %v873 = vsel %vm872, %v865, %v869
    %v874 = vand.u32 2147483647, %v864
    %vm875 = vcmp.eq.f32.partialorder %v874, 8.507059e+37
    %v876 = vand.u32 %v864, 2147483648
    %v877 = vor.u32 1.1754944e-38, %v876
    %v878 = vsel %vm875, %v877, %v873
    %v879 = vmul.f32 1.0, %v878
    %881 = vrot.lane.b32.xlu0 %v857, 64
    %v882 = vpop.permute.xlu0 %881
    %v884 = vmul.f32 %v879, %v882
    %886 = vrot.lane.b32.xlu0 %v884, 64
    %v887 = vpop.permute.xlu0 %886
    %v889 = vadd.f32 %v859, %v887
    %v890 = vtanh.pop %v889
    %v891 = vsub.f32 1.0, %v879
    %893 = vrot.lane.b32.xlu0 %v890, 96
    %v894 = vpop.permute.xlu0 %893
    %v896 = vmul.f32 %v891, %v894
    %v897 = vmul.f32 %v879, %v833
    %v898 = vadd.f32 %v896, %v897
    %900 = vrot.lane.b32.xlu0 %v898, 96
    %v901 = vpop.permute.xlu0 %900
    %v902 = vsel %vm121, %v901, 0
    %904 = vmatpush.msra.mxu0 0.0
    %905 = vmatpush.msra.mxu0 0.0
    %906 = vmatpush.msra.mxu0 0.0
    %907 = vmatpush.msra.mxu0 0.0
    %908 = vmatpush.msra.mxu0 0.0
    %909 = vmatpush.msra.mxu0 0.0
    %910 = vmatpush.msra.mxu0 0.0
    %911 = vmatpush.msra.mxu0 0.0
    %912 = vmatpush.msra.mxu0 0.0
    %913 = vmatpush.msra.mxu0 0.0
    %914 = vmatpush.msra.mxu0 0.0
    %915 = vmatpush.msra.mxu0 0.0
    %916 = vmatpush.msra.mxu0 %v704
    %917 = vmatpush.msra.mxu0 %v703
    %918 = vmatpush.msra.mxu0 %v702
    %919 = vmatpush.msra.mxu0 %v701
    %920 = vmatmul.f32.gmra.mxu0 %v902
    %v921 = vpop.f32.mrf.mxu0
    %v922 = vadd.f32 %v707, %v921
    %923 = vdwg.mxu0
    %v924 = vld [vmem:[#allocation2 + $0x6] sm:$0x3]
    %v925 = vadd.f32 %v924, %v922
    %v926 = vxor.u32 %v925, 2147483648
    %v927 = vmul.f32 %v926, 1.442695
    %v928 = vpow.pop %v927
    %v929 = vadd.f32 %v928, 1.0
    %v930 = vrcp.pop %v929
    %v931 = vmul.f32 %v929, %v930
    %v932 = vsub.f32 1.0, %v931
    %v933 = vmul.f32 %v930, %v932
    %v934 = vadd.f32 %v930, %v933
    %vm935 = vweird.f32 %v929
    %vm936 = vweird.f32 %v930
    %vm937 = vmor %vm935, %vm936
    %v938 = vsel %vm937, %v930, %v934
    %v939 = vand.u32 2147483647, %v929
    %vm940 = vcmp.eq.f32.partialorder %v939, 8.507059e+37
    %v941 = vand.u32 %v929, 2147483648
    %v942 = vor.u32 1.1754944e-38, %v941
    %v943 = vsel %vm940, %v942, %v938
    %v944 = vmul.f32 1.0, %v943
    %946 = vrot.lane.b32.xlu0 %v922, 64
    %v947 = vpop.permute.xlu0 %946
    %v949 = vmul.f32 %v944, %v947
    %951 = vrot.lane.b32.xlu0 %v949, 64
    %v952 = vpop.permute.xlu0 %951
    %v954 = vadd.f32 %v924, %v952
    %v955 = vtanh.pop %v954
    %v956 = vsub.f32 1.0, %v944
    %958 = vrot.lane.b32.xlu0 %v955, 96
    %v959 = vpop.permute.xlu0 %958
    %v961 = vmul.f32 %v956, %v959
    %v962 = vmul.f32 %v944, %v898
    %v963 = vadd.f32 %v961, %v962
    %965 = vrot.lane.b32.xlu0 %v963, 96
    %v966 = vpop.permute.xlu0 %965
    %v967 = vsel %vm121, %v966, 0
    %969 = vmatpush.msra.mxu0 0.0
    %970 = vmatpush.msra.mxu0 0.0
    %971 = vmatpush.msra.mxu0 0.0
    %972 = vmatpush.msra.mxu0 0.0
    %973 = vmatpush.msra.mxu0 0.0
    %974 = vmatpush.msra.mxu0 0.0
    %975 = vmatpush.msra.mxu0 0.0
    %976 = vmatpush.msra.mxu0 0.0
    %977 = vmatpush.msra.mxu0 0.0
    %978 = vmatpush.msra.mxu0 0.0
    %979 = vmatpush.msra.mxu0 0.0
    %980 = vmatpush.msra.mxu0 0.0
    %981 = vmatpush.msra.mxu0 %v704
    %982 = vmatpush.msra.mxu0 %v703
    %983 = vmatpush.msra.mxu0 %v702
    %984 = vmatpush.msra.mxu0 %v701
    %985 = vmatmul.f32.gmra.mxu0 %v967
    %v986 = vpop.f32.mrf.mxu0
    %v987 = vadd.f32 %v707, %v986
    %988 = vdwg.mxu0
    %v989 = vld [vmem:[#allocation2 + $0x8] sm:$0x3]
    %v990 = vadd.f32 %v989, %v987
    %v991 = vxor.u32 %v990, 2147483648
    %v992 = vmul.f32 %v991, 1.442695
    %v993 = vpow.pop %v992
    %v994 = vadd.f32 %v993, 1.0
    %v995 = vrcp.pop %v994
    %v996 = vmul.f32 %v994, %v995
    %v997 = vsub.f32 1.0, %v996
    %v998 = vmul.f32 %v995, %v997
    %v999 = vadd.f32 %v995, %v998
    %vm1000 = vweird.f32 %v994
    %vm1001 = vweird.f32 %v995
    %vm1002 = vmor %vm1000, %vm1001
    %v1003 = vsel %vm1002, %v995, %v999
    %v1004 = vand.u32 2147483647, %v994
    %vm1005 = vcmp.eq.f32.partialorder %v1004, 8.507059e+37
    %v1006 = vand.u32 %v994, 2147483648
    %v1007 = vor.u32 1.1754944e-38, %v1006
    %v1008 = vsel %vm1005, %v1007, %v1003
    %v1009 = vmul.f32 1.0, %v1008
    %1011 = vrot.lane.b32.xlu0 %v987, 64
    %v1012 = vpop.permute.xlu0 %1011
    %v1014 = vmul.f32 %v1009, %v1012
    %1016 = vrot.lane.b32.xlu0 %v1014, 64
    %v1017 = vpop.permute.xlu0 %1016
    %v1019 = vadd.f32 %v989, %v1017
    %v1020 = vtanh.pop %v1019
    %v1021 = vsub.f32 1.0, %v1009
    %1023 = vrot.lane.b32.xlu0 %v1020, 96
    %v1024 = vpop.permute.xlu0 %1023
    %v1026 = vmul.f32 %v1021, %v1024
    %v1027 = vmul.f32 %v1009, %v963
    %v1028 = vadd.f32 %v1026, %v1027
    %1030 = vrot.lane.b32.xlu0 %v1028, 96
    %v1031 = vpop.permute.xlu0 %1030
    %v1032 = vsel %vm121, %v1031, 0
    %1034 = vmatpush.msra.mxu0 0.0
    %1035 = vmatpush.msra.mxu0 0.0
    %1036 = vmatpush.msra.mxu0 0.0
    %1037 = vmatpush.msra.mxu0 0.0
    %1038 = vmatpush.msra.mxu0 0.0
    %1039 = vmatpush.msra.mxu0 0.0
    %1040 = vmatpush.msra.mxu0 0.0
    %1041 = vmatpush.msra.mxu0 0.0
    %1042 = vmatpush.msra.mxu0 0.0
    %1043 = vmatpush.msra.mxu0 0.0
    %1044 = vmatpush.msra.mxu0 0.0
    %1045 = vmatpush.msra.mxu0 0.0
    %1046 = vmatpush.msra.mxu0 %v704
    %1047 = vmatpush.msra.mxu0 %v703
    %1048 = vmatpush.msra.mxu0 %v702
    %1049 = vmatpush.msra.mxu0 %v701
    %1050 = vmatmul.f32.gmra.mxu0 %v1032
    %v1051 = vpop.f32.mrf.mxu0
    %v1052 = vadd.f32 %v707, %v1051
    %1053 = vdwg.mxu0
    %v1054 = vld [vmem:[#allocation2 + $0xa] sm:$0x3]
    %v1055 = vadd.f32 %v1054, %v1052
    %v1056 = vxor.u32 %v1055, 2147483648
    %v1057 = vmul.f32 %v1056, 1.442695
    %v1058 = vpow.pop %v1057
    %v1059 = vadd.f32 %v1058, 1.0
    %v1060 = vrcp.pop %v1059
    %v1061 = vmul.f32 %v1059, %v1060
    %v1062 = vsub.f32 1.0, %v1061
    %v1063 = vmul.f32 %v1060, %v1062
    %v1064 = vadd.f32 %v1060, %v1063
    %vm1065 = vweird.f32 %v1059
    %vm1066 = vweird.f32 %v1060
    %vm1067 = vmor %vm1065, %vm1066
    %v1068 = vsel %vm1067, %v1060, %v1064
    %v1069 = vand.u32 2147483647, %v1059
    %vm1070 = vcmp.eq.f32.partialorder %v1069, 8.507059e+37
    %v1071 = vand.u32 %v1059, 2147483648
    %v1072 = vor.u32 1.1754944e-38, %v1071
    %v1073 = vsel %vm1070, %v1072, %v1068
    %v1074 = vmul.f32 1.0, %v1073
    %1076 = vrot.lane.b32.xlu0 %v1052, 64
    %v1077 = vpop.permute.xlu0 %1076
    %v1079 = vmul.f32 %v1074, %v1077
    %1081 = vrot.lane.b32.xlu0 %v1079, 64
    %v1082 = vpop.permute.xlu0 %1081
    %v1084 = vadd.f32 %v1054, %v1082
    %v1085 = vtanh.pop %v1084
    %v1086 = vsub.f32 1.0, %v1074
    %1088 = vrot.lane.b32.xlu0 %v1085, 96
    %v1089 = vpop.permute.xlu0 %1088
    %v1091 = vmul.f32 %v1086, %v1089
    %v1092 = vmul.f32 %v1074, %v1028
    %v1093 = vadd.f32 %v1091, %v1092
    %1095 = vrot.lane.b32.xlu0 %v1093, 96
    %v1096 = vpop.permute.xlu0 %1095
    %v1097 = vsel %vm121, %v1096, 0
    %1099 = vmatpush.msra.mxu0 0.0
    %1100 = vmatpush.msra.mxu0 0.0
    %1101 = vmatpush.msra.mxu0 0.0
    %1102 = vmatpush.msra.mxu0 0.0
    %1103 = vmatpush.msra.mxu0 0.0
    %1104 = vmatpush.msra.mxu0 0.0
    %1105 = vmatpush.msra.mxu0 0.0
    %1106 = vmatpush.msra.mxu0 0.0
    %1107 = vmatpush.msra.mxu0 0.0
    %1108 = vmatpush.msra.mxu0 0.0
    %1109 = vmatpush.msra.mxu0 0.0
    %1110 = vmatpush.msra.mxu0 0.0
    %1111 = vmatpush.msra.mxu0 %v704
    %1112 = vmatpush.msra.mxu0 %v703
    %1113 = vmatpush.msra.mxu0 %v702
    %1114 = vmatpush.msra.mxu0 %v701
    %1115 = vmatmul.f32.gmra.mxu0 %v1097
    %v1116 = vpop.f32.mrf.mxu0
    %v1117 = vadd.f32 %v707, %v1116
    %1118 = vdwg.mxu0
    %v1119 = vld [vmem:[#allocation2 + $0xc] sm:$0x3]
    %v1120 = vadd.f32 %v1119, %v1117
    %v1121 = vxor.u32 %v1120, 2147483648
    %v1122 = vmul.f32 %v1121, 1.442695
    %v1123 = vpow.pop %v1122
    %v1124 = vadd.f32 %v1123, 1.0
    %v1125 = vrcp.pop %v1124
    %v1126 = vmul.f32 %v1124, %v1125
    %v1127 = vsub.f32 1.0, %v1126
    %v1128 = vmul.f32 %v1125, %v1127
    %v1129 = vadd.f32 %v1125, %v1128
    %vm1130 = vweird.f32 %v1124
    %vm1131 = vweird.f32 %v1125
    %vm1132 = vmor %vm1130, %vm1131
    %v1133 = vsel %vm1132, %v1125, %v1129
    %v1134 = vand.u32 2147483647, %v1124
    %vm1135 = vcmp.eq.f32.partialorder %v1134, 8.507059e+37
    %v1136 = vand.u32 %v1124, 2147483648
    %v1137 = vor.u32 1.1754944e-38, %v1136
    %v1138 = vsel %vm1135, %v1137, %v1133
    %v1139 = vmul.f32 1.0, %v1138
    %1141 = vrot.lane.b32.xlu0 %v1117, 64
    %v1142 = vpop.permute.xlu0 %1141
    %v1144 = vmul.f32 %v1139, %v1142
    %1146 = vrot.lane.b32.xlu0 %v1144, 64
    %v1147 = vpop.permute.xlu0 %1146
    %v1149 = vadd.f32 %v1119, %v1147
    %v1150 = vtanh.pop %v1149
    %v1151 = vsub.f32 1.0, %v1139
    %1153 = vrot.lane.b32.xlu0 %v1150, 96
    %v1154 = vpop.permute.xlu0 %1153
    %v1156 = vmul.f32 %v1151, %v1154
    %v1157 = vmul.f32 %v1139, %v1093
    %v1158 = vadd.f32 %v1156, %v1157
    %1160 = vrot.lane.b32.xlu0 %v1158, 96
    %v1161 = vpop.permute.xlu0 %1160
    %v1162 = vsel %vm121, %v1161, 0
    %1164 = vmatpush.msra.mxu0 0.0
    %1165 = vmatpush.msra.mxu0 0.0
    %1166 = vmatpush.msra.mxu0 0.0
    %1167 = vmatpush.msra.mxu0 0.0
    %1168 = vmatpush.msra.mxu0 0.0
    %1169 = vmatpush.msra.mxu0 0.0
    %1170 = vmatpush.msra.mxu0 0.0
    %1171 = vmatpush.msra.mxu0 0.0
    %1172 = vmatpush.msra.mxu0 0.0
    %1173 = vmatpush.msra.mxu0 0.0
    %1174 = vmatpush.msra.mxu0 0.0
    %1175 = vmatpush.msra.mxu0 0.0
    %1176 = vmatpush.msra.mxu0 %v704
    %1177 = vmatpush.msra.mxu0 %v703
    %1178 = vmatpush.msra.mxu0 %v702
    %1179 = vmatpush.msra.mxu0 %v701
    %1180 = vmatmul.f32.gmra.mxu0 %v1162
    %v1181 = vpop.f32.mrf.mxu0
    %v1182 = vadd.f32 %v707, %v1181
    %1183 = vdwg.mxu0
    %v1184 = vld [vmem:[#allocation2 + $0xe] sm:$0x3]
    %v1185 = vadd.f32 %v1184, %v1182
    %v1186 = vxor.u32 %v1185, 2147483648
    %v1187 = vmul.f32 %v1186, 1.442695
    %v1188 = vpow.pop %v1187
    %v1189 = vadd.f32 %v1188, 1.0
    %v1190 = vrcp.pop %v1189
    %v1191 = vmul.f32 %v1189, %v1190
    %v1192 = vsub.f32 1.0, %v1191
    %v1193 = vmul.f32 %v1190, %v1192
    %v1194 = vadd.f32 %v1190, %v1193
    %vm1195 = vweird.f32 %v1189
    %vm1196 = vweird.f32 %v1190
    %vm1197 = vmor %vm1195, %vm1196
    %v1198 = vsel %vm1197, %v1190, %v1194
    %v1199 = vand.u32 2147483647, %v1189
    %vm1200 = vcmp.eq.f32.partialorder %v1199, 8.507059e+37
    %v1201 = vand.u32 %v1189, 2147483648
    %v1202 = vor.u32 1.1754944e-38, %v1201
    %v1203 = vsel %vm1200, %v1202, %v1198
    %v1204 = vmul.f32 1.0, %v1203
    %1206 = vrot.lane.b32.xlu0 %v1182, 64
    %v1207 = vpop.permute.xlu0 %1206
    %v1209 = vmul.f32 %v1204, %v1207
    %1211 = vrot.lane.b32.xlu0 %v1209, 64
    %v1212 = vpop.permute.xlu0 %1211
    %v1214 = vadd.f32 %v1184, %v1212
    %v1215 = vtanh.pop %v1214
    %v1216 = vsub.f32 1.0, %v1204
    %1218 = vrot.lane.b32.xlu0 %v1215, 96
    %v1219 = vpop.permute.xlu0 %1218
    %v1221 = vmul.f32 %v1216, %v1219
    %v1222 = vmul.f32 %v1204, %v1158
    %v1223 = vadd.f32 %v1221, %v1222
    %v1224 = vld [vmem:[%s9] sm:$0xff]
    %v1225 = vld [vmem:[%s9 + $0x8] sm:$0xff]
    %v1226 = vld [vmem:[%s9 + $0x10] sm:$0xff]
    %v1227 = vld [vmem:[%s9 + $0x18] sm:$0xff]
    %v1228 = vld [vmem:[#allocation4] sm:$0x1]
    %v1230 = vperm.slane %v1228, 0
    %1233 = vrot.lane.b32.xlu0 %v1223, 96
    %v1234 = vpop.permute.xlu0 %1233
    %v1235 = vsel %vm121, %v1234, 0
    %1237 = vmatpush.msra.mxu0 0.0
    %1238 = vmatpush.msra.mxu0 0.0
    %1239 = vmatpush.msra.mxu0 0.0
    %1240 = vmatpush.msra.mxu0 0.0
    %1241 = vmatpush.msra.mxu0 0.0
    %1242 = vmatpush.msra.mxu0 0.0
    %1243 = vmatpush.msra.mxu0 0.0
    %1244 = vmatpush.msra.mxu0 0.0
    %1245 = vmatpush.msra.mxu0 0.0
    %1246 = vmatpush.msra.mxu0 0.0
    %1247 = vmatpush.msra.mxu0 0.0
    %1248 = vmatpush.msra.mxu0 0.0
    %1249 = vmatpush.msra.mxu0 %v1227
    %1250 = vmatpush.msra.mxu0 %v1226
    %1251 = vmatpush.msra.mxu0 %v1225
    %1252 = vmatpush.msra.mxu0 %v1224
    %1253 = vmatmul.f32.gmra.mxu0 %v1235
    %v1254 = vpop.f32.mrf.mxu0
    %v1255 = vadd.f32 %v1230, %v1254
    %1256 = vdwg.mxu0
    %vm1257 = vcmask 1024
    %1258 = vst.msk [vmem:[%s11] sm:$0x3] %vm1257, %v1255
    // Predicated region
    $region54: #{gru_classifier_forward.1} parent=1 // pred_check
      _
    $region55: #{gru_classifier_forward.1} parent=1 // pred_check_branch
      %1260 = sbr.rel (0) target = $region57
    $region56: #{gru_classifier_forward.1} parent=1 // pred_region
      _
    $region57: #{gru_classifier_forward.1} parent=1 // pred_fallthru
      _
    // Predicated region
    $region58: #{gru_classifier_forward.1} parent=1 // pred_check
      _
    $region59: #{gru_classifier_forward.1} parent=1 // pred_check_branch
      %1262 = sbr.rel (0) target = $region61
    $region60: #{gru_classifier_forward.1} parent=1 // pred_region
      _
    $region61: #{gru_classifier_forward.1} parent=1 // pred_fallthru
      _
    %1263 = vsyncpa [#allocation6], 1
    %1264 = vsyncpa [#allocation8], 1

</llo_original>
